<compile_context>
chip_gen: v7x
topology: tpu7x:2x2x1
jax: 0.10.0
libtpu: 0.0.40
codegen_flags: <defaults>
</compile_context>

<pallas_src>
import functools

import jax
import jax.numpy as jnp
from jax import lax
from jax.experimental import pallas as pl
from jax.experimental.pallas import tpu as pltpu

_VMEM_LIMIT = 48 * 1024 * 1024


# ----------------------------------------------------------------------------
# Fused per-sample kernel: features + instance head + patch head + patch loss
# ----------------------------------------------------------------------------
def _fused_view_kernel(x1_ref, x2_ref, lab_ref,
                       wf_ref, bf_ref, w1_ref, b1_ref, w2_ref, b2_ref,
                       w3_ref, b3_ref, wp_ref, bp_ref,
                       inst1_ref, inst2_ref, ploss_ref, pvalid_ref,
                       *, n_patches, temperature):
    P = n_patches
    inv_t = jnp.float32(1.0 / temperature)

    wf = wf_ref[...]
    bf = bf_ref[...]
    w1 = w1_ref[...]
    b1 = b1_ref[...]
    w2 = w2_ref[...]
    b2 = b2_ref[...]
    w3 = w3_ref[...]
    b3 = b3_ref[...]
    wp = wp_ref[...]
    bp = bp_ref[...]

    # One-hot patch assignment built in-kernel from int32 labels.
    lab = lab_ref[0]                                              # (1, HW) int32
    hw = lab.shape[1]
    p_iota = lax.broadcasted_iota(jnp.int32, (P, hw), 0)
    onehot = jnp.where(lab == p_iota, 1.0, 0.0)                   # (P, HW) f32
    counts = jnp.sum(onehot, axis=1, keepdims=True)               # (P, 1)
    onehot_b = onehot.astype(jnp.bfloat16)
    inv_counts = 1.0 / jnp.maximum(counts, 1.0)

    def one_view(x):                                              # x: (HW, C) bf16
        # 1x1-conv feature extractor
        feats = jnp.dot(x, wf, preferred_element_type=jnp.float32) + bf
        feats = jnp.maximum(feats, 0.0)                           # (HW, F) f32
        feats_b = feats.astype(jnp.bfloat16)
        # instance branch: global mean pool -> 3-layer MLP head
        h = jnp.mean(feats, axis=0, keepdims=True)                # (1, F)
        h = jnp.maximum(jnp.dot(h.astype(jnp.bfloat16), w1,
                                preferred_element_type=jnp.float32) + b1, 0.0)
        h = jnp.maximum(jnp.dot(h.astype(jnp.bfloat16), w2,
                                preferred_element_type=jnp.float32) + b2, 0.0)
        inst = jnp.dot(h.astype(jnp.bfloat16), w3,
                       preferred_element_type=jnp.float32) + b3   # (1, Dp)
        # patch branch: group-by-label mean pooling -> linear projection
        pooled = jnp.dot(onehot_b, feats_b,
                         preferred_element_type=jnp.float32) * inv_counts  # (P, F)
        pemb = jnp.dot(pooled.astype(jnp.bfloat16), wp,
                       preferred_element_type=jnp.float32) + bp   # (P, Dp)
        return inst, pemb

    inst1, pemb1 = one_view(x1_ref[0])
    inst2, pemb2 = one_view(x2_ref[0])
    inst1_ref[...] = inst1[None]
    inst2_ref[...] = inst2[None]

    # --- per-sample patch NT-Xent (cross_entropy with ignore_index == empty) ---
    e = jnp.concatenate([pemb1, pemb2], axis=0)                   # (Q, Dp), Q = 2P
    q = 2 * P
    ss = jnp.sum(e * e, axis=1, keepdims=True)
    en = e * lax.rsqrt(jnp.maximum(ss, jnp.float32(1e-24)))       # L2 normalize
    eb = en.astype(jnp.bfloat16)
    logits = lax.dot_general(eb, eb, (((1,), (1,)), ((), ())),
                             preferred_element_type=jnp.float32) * inv_t  # (Q, Q)
    row = lax.broadcasted_iota(jnp.int32, (q, q), 0)
    col = lax.broadcasted_iota(jnp.int32, (q, q), 1)
    masked = jnp.where(row == col, jnp.float32(-1e30), logits)    # drop self-sim
    m = jnp.max(masked, axis=1, keepdims=True)
    lse = m + jnp.log(jnp.sum(jnp.exp(masked - m), axis=1, keepdims=True))  # (Q,1)
    # positive logit computed directly from the paired-view rows
    pos_half = jnp.sum(en[:P] * en[P:], axis=1, keepdims=True) * inv_t      # (P,1)
    pos = jnp.concatenate([pos_half, pos_half], axis=0)                     # (Q,1)
    valid = jnp.concatenate([counts, counts], axis=0) > 0.0                 # (Q,1)
    per_row = jnp.where(valid, lse - pos, 0.0)
    ploss_ref[...] = jnp.sum(per_row).reshape(1, 1, 1)
    pvalid_ref[...] = jnp.sum(valid.astype(jnp.float32)).reshape(1, 1, 1)


# ----------------------------------------------------------------------------
# Instance NT-Xent (couples the whole gathered batch -> separate small kernel)
# ----------------------------------------------------------------------------
def _instance_loss_kernel(z1_ref, z2_ref, o_ref, *, temperature):
    inv_t = jnp.float32(1.0 / temperature)
    z1 = z1_ref[...].astype(jnp.float32)
    z2 = z2_ref[...].astype(jnp.float32)

    def _norm(z):
        ss = jnp.sum(z * z, axis=1, keepdims=True)
        return z * lax.rsqrt(jnp.maximum(ss, jnp.float32(1e-24)))

    e1 = _norm(z1)
    e2 = _norm(z2)
    e = jnp.concatenate([e1, e2], axis=0)                         # (2B, Dp)
    n = e.shape[0]
    eb = e.astype(jnp.bfloat16)
    logits = lax.dot_general(eb, eb, (((1,), (1,)), ((), ())),
                             preferred_element_type=jnp.float32) * inv_t  # (2B,2B)
    row = lax.broadcasted_iota(jnp.int32, (n, n), 0)
    col = lax.broadcasted_iota(jnp.int32, (n, n), 1)
    masked = jnp.where(row == col, jnp.float32(-1e30), logits)
    m = jnp.max(masked, axis=1, keepdims=True)
    lse = m + jnp.log(jnp.sum(jnp.exp(masked - m), axis=1, keepdims=True))  # (n,1)
    # each pair (i, i+B) shares the same positive logit <e1_i, e2_i>/T
    pos = jnp.sum(e1 * e2, axis=1, keepdims=True) * inv_t                   # (B,1)
    o_ref[...] = ((jnp.sum(lse) - 2.0 * jnp.sum(pos)) / n).reshape(1, 1)


def instance_contrastive_loss(z1, z2, temperature):
    vmem = pl.BlockSpec(memory_space=pltpu.MemorySpace.VMEM)
    out = pl.pallas_call(
        functools.partial(_instance_loss_kernel, temperature=temperature),
        out_shape=jax.ShapeDtypeStruct((1, 1), jnp.float32),
        in_specs=[vmem, vmem],
        out_specs=vmem,
        compiler_params=pltpu.CompilerParams(vmem_limit_bytes=_VMEM_LIMIT),
    )(z1.astype(jnp.float32), z2.astype(jnp.float32))
    return out[0, 0]


# ----------------------------------------------------------------------------
# MultiLevelSimCLR (Instance + Patch) forward
# ----------------------------------------------------------------------------
class MultiLevelSimCLRPallas:
    def __init__(self, in_channels, feat_dim, proj_dim, n_patches, temperature):
        self.C = int(in_channels)
        self.F = int(feat_dim)
        self.D = int(proj_dim)
        # projection dim zero-padded to a lane-dense multiple of 128; the extra
        # zero columns do not change norms / dot products, hence the losses.
        self.Dp = max(128, ((self.D + 127) // 128) * 128)
        self.P = int(n_patches)
        self.temperature = float(temperature)

        def init(key, shape, scale=0.1):
            return scale * jax.random.normal(key, shape, dtype=jnp.float32)

        def pad_cols(w, total):
            return jnp.pad(w, ((0, 0), (0, total - w.shape[1])))

        ks = jax.random.split(jax.random.PRNGKey(42), 10)
        # TODO(synk): encoder / ProjectionHead are external dependencies in the
        # original; synthesized here as a 1x1-conv feature extractor + MLP heads.
        self.w_feat = init(ks[0], (self.C, self.F)).astype(jnp.bfloat16)
        self.b_feat = init(ks[1], (1, self.F))
        self.w_i1 = init(ks[2], (self.F, self.F)).astype(jnp.bfloat16)
        self.b_i1 = init(ks[3], (1, self.F))
        self.w_i2 = init(ks[4], (self.F, self.F)).astype(jnp.bfloat16)
        self.b_i2 = init(ks[5], (1, self.F))
        self.w_i3 = pad_cols(init(ks[6], (self.F, self.D)), self.Dp).astype(jnp.bfloat16)
        self.b_i3 = pad_cols(init(ks[7], (1, self.D)), self.Dp)
        self.w_patch = pad_cols(init(ks[8], (self.F, self.D)), self.Dp).astype(jnp.bfloat16)
        self.b_patch = pad_cols(init(ks[9], (1, self.D)), self.Dp)

    def _fused_views(self, x1r, x2r, labels):
        B, HW, C = x1r.shape
        F, Dp, P = self.F, self.Dp, self.P

        data_spec = pl.BlockSpec((1, HW, C), lambda b: (b, 0, 0))
        lab_spec = pl.BlockSpec((1, 1, HW), lambda b: (b, 0, 0))

        def wspec(r, c):
            return pl.BlockSpec((r, c), lambda b: (0, 0))

        return pl.pallas_call(
            functools.partial(_fused_view_kernel, n_patches=P,
                              temperature=self.temperature),
            grid=(B,),
            in_specs=[data_spec, data_spec, lab_spec,
                      wspec(C, F), wspec(1, F),
                      wspec(F, F), wspec(1, F),
                      wspec(F, F), wspec(1, F),
                      wspec(F, Dp), wspec(1, Dp),
                      wspec(F, Dp), wspec(1, Dp)],
            out_specs=[pl.BlockSpec((1, 1, Dp), lambda b: (b, 0, 0)),
                       pl.BlockSpec((1, 1, Dp), lambda b: (b, 0, 0)),
                       pl.BlockSpec((1, 1, 1), lambda b: (b, 0, 0)),
                       pl.BlockSpec((1, 1, 1), lambda b: (b, 0, 0))],
            out_shape=[jax.ShapeDtypeStruct((B, 1, Dp), jnp.float32),
                       jax.ShapeDtypeStruct((B, 1, Dp), jnp.float32),
                       jax.ShapeDtypeStruct((B, 1, 1), jnp.float32),
                       jax.ShapeDtypeStruct((B, 1, 1), jnp.float32)],
            compiler_params=pltpu.CompilerParams(
                dimension_semantics=("parallel",),
                vmem_limit_bytes=_VMEM_LIMIT),
        )(x1r, x2r, labels,
          self.w_feat, self.b_feat, self.w_i1, self.b_i1,
          self.w_i2, self.b_i2, self.w_i3, self.b_i3,
          self.w_patch, self.b_patch)

    def forward(self, x1, x2, patch_labels1):
        # TODO(synk): dist.all_gather (gather_concat) is the identity for a
        # single device / world_size == 1, which is what is modeled here.
        B, C, H, W = x1.shape
        HW = H * W
        # NCHW -> (B, HW, C): feature dim last so every in-kernel matmul is a
        # plain NN matmul (no in-kernel transposes); bf16 matmul operands.
        x1r = jnp.transpose(x1, (0, 2, 3, 1)).reshape(B, HW, C).astype(jnp.bfloat16)
        x2r = jnp.transpose(x2, (0, 2, 3, 1)).reshape(B, HW, C).astype(jnp.bfloat16)
        labels = patch_labels1.reshape(B, 1, HW).astype(jnp.int32)

        inst1, inst2, ploss, pvalid = self._fused_views(x1r, x2r, labels)

        # patch cross-entropy: mean over non-empty patches across the batch
        patch_ce = jnp.sum(ploss) / jnp.maximum(jnp.sum(pvalid), 1.0)
        ins_ce = instance_contrastive_loss(inst1.reshape(B, self.Dp),
                                           inst2.reshape(B, self.Dp),
                                           self.temperature)
        loss = ins_ce + patch_ce           # weights default to 1, scale_factor=1
        return loss, {"instance_ce": ins_ce, "patch_ce": patch_ce}

    # TODO(synk): Points / PointsPatch locality levels use torch.multinomial
    # sampling inside sample_features_from_patches; not reproduced here.


# ----------------------------------------------------------------------------
if __name__ == "__main__":
    B, C, H, W = 2, 4, 16, 16
    FEAT, PROJ, P = 32, 32, 4
    TEMPERATURE = 0.5

    model = MultiLevelSimCLRPallas(C, FEAT, PROJ, P, TEMPERATURE)

    key = jax.random.PRNGKey(0)
    k1, k2, k3 = jax.random.split(key, 3)
    x1 = jax.random.normal(k1, (B, C, H, W), dtype=jnp.float32)
    x2 = jax.random.normal(k2, (B, C, H, W), dtype=jnp.float32)
    patch_labels1 = jax.random.randint(k3, (B, H * W), 0, P, dtype=jnp.int32)

    fwd = jax.jit(model.forward)
    loss, loss_dict = fwd(x1, x2, patch_labels1)
    jax.block_until_ready(loss)
    jax.block_until_ready(loss_dict)
    print("KERNEL_OK")
</pallas_src>

<mosaic_0001>
module attributes {stable_mosaic.version = 11 : i64} {
  func.func @_instance_loss_kernel(%arg0: memref<2x128xf32, #tpu.memory_space<vmem>>, %arg1: memref<2x128xf32, #tpu.memory_space<vmem>>, %arg2: memref<1x1xf32, #tpu.memory_space<vmem>>) attributes {dimension_semantics = [], scalar_prefetch = 0 : i64, scratch_operands = 0 : i64, tpu.core_type = #tpu.core_type<tc>} {
    %c0 = arith.constant 0 : index
    %c0_0 = arith.constant 0 : index
    %0 = vector.load %arg0[%c0, %c0_0] : memref<2x128xf32, #tpu.memory_space<vmem>>, vector<2x128xf32>
    %c0_1 = arith.constant 0 : index
    %c0_2 = arith.constant 0 : index
    %1 = vector.load %arg1[%c0_1, %c0_2] : memref<2x128xf32, #tpu.memory_space<vmem>>, vector<2x128xf32>
    %2 = arith.mulf %0, %0 : vector<2x128xf32>
    %cst = arith.constant dense<0.000000e+00> : vector<2xf32>
    %3 = vector.multi_reduction <add>, %2, %cst [1] : vector<2x128xf32> to vector<2xf32>
    %4 = vector.shape_cast %3 : vector<2xf32> to vector<2x1xf32>
    %cst_3 = arith.constant 1.000000e-24 : f32
    %5 = vector.broadcast %cst_3 : f32 to vector<2x1xf32>
    %6 = arith.maximumf %4, %5 : vector<2x1xf32>
    %7 = math.rsqrt %6 : vector<2x1xf32>
    %8 = vector.broadcast %7 : vector<2x1xf32> to vector<2x128xf32>
    %9 = arith.mulf %0, %8 : vector<2x128xf32>
    %10 = arith.mulf %1, %1 : vector<2x128xf32>
    %cst_4 = arith.constant dense<0.000000e+00> : vector<2xf32>
    %11 = vector.multi_reduction <add>, %10, %cst_4 [1] : vector<2x128xf32> to vector<2xf32>
    %12 = vector.shape_cast %11 : vector<2xf32> to vector<2x1xf32>
    %cst_5 = arith.constant 1.000000e-24 : f32
    %13 = vector.broadcast %cst_5 : f32 to vector<2x1xf32>
    %14 = arith.maximumf %12, %13 : vector<2x1xf32>
    %15 = math.rsqrt %14 : vector<2x1xf32>
    %16 = vector.broadcast %15 : vector<2x1xf32> to vector<2x128xf32>
    %17 = arith.mulf %1, %16 : vector<2x128xf32>
    %18 = tpu.concatenate %9, %17 in 0 : vector<2x128xf32>, vector<2x128xf32> -> vector<4x128xf32>
    %19 = arith.truncf %18 : vector<4x128xf32> to vector<4x128xbf16>
    %cst_6 = arith.constant dense<0.000000e+00> : vector<4x4xf32>
    %20 = tpu.matmul %19, %19, %cst_6 {dimension_numbers = #tpu.dot_dimension_numbers<[1], [1], [0], [0], [0, 0, 1, 0], [], []>} : vector<4x128xbf16>, vector<4x128xbf16>, vector<4x4xf32> -> vector<4x4xf32>
    %cst_7 = arith.constant 2.000000e+00 : f32
    %21 = vector.broadcast %cst_7 : f32 to vector<4x4xf32>
    %22 = arith.mulf %20, %21 : vector<4x4xf32>
    %23 = tpu.iota {dimensions = array<i32: 0>} : vector<4x4xi32>
    %24 = tpu.iota {dimensions = array<i32: 1>} : vector<4x4xi32>
    %25 = arith.cmpi eq, %23, %24 : vector<4x4xi32>
    %cst_8 = arith.constant -1.000000e+30 : f32
    %26 = vector.broadcast %cst_8 : f32 to vector<4x4xf32>
    %27 = arith.select %25, %26, %22 : vector<4x4xi1>, vector<4x4xf32>
    %cst_9 = arith.constant dense<0xFF800000> : vector<4xf32>
    %28 = vector.multi_reduction <maximumf>, %27, %cst_9 [1] : vector<4x4xf32> to vector<4xf32>
    %29 = vector.shape_cast %28 : vector<4xf32> to vector<4x1xf32>
    %30 = vector.broadcast %29 : vector<4x1xf32> to vector<4x4xf32>
    %31 = arith.subf %27, %30 : vector<4x4xf32>
    %32 = math.exp %31 : vector<4x4xf32>
    %cst_10 = arith.constant dense<0.000000e+00> : vector<4xf32>
    %33 = vector.multi_reduction <add>, %32, %cst_10 [1] : vector<4x4xf32> to vector<4xf32>
    %34 = vector.shape_cast %33 : vector<4xf32> to vector<4x1xf32>
    %35 = math.log %34 : vector<4x1xf32>
    %36 = arith.addf %29, %35 : vector<4x1xf32>
    %37 = arith.mulf %9, %17 : vector<2x128xf32>
    %cst_11 = arith.constant dense<0.000000e+00> : vector<2xf32>
    %38 = vector.multi_reduction <add>, %37, %cst_11 [1] : vector<2x128xf32> to vector<2xf32>
    %39 = vector.shape_cast %38 : vector<2xf32> to vector<2x1xf32>
    %cst_12 = arith.constant 2.000000e+00 : f32
    %40 = vector.broadcast %cst_12 : f32 to vector<2x1xf32>
    %41 = arith.mulf %39, %40 : vector<2x1xf32>
    %42 = vector.shape_cast %36 : vector<4x1xf32> to vector<1x4x1xf32>
    %cst_13 = arith.constant dense<0.000000e+00> : vector<1xf32>
    %43 = vector.multi_reduction <add>, %42, %cst_13 [1, 2] : vector<1x4x1xf32> to vector<1xf32>
    %44 = vector.shape_cast %43 : vector<1xf32> to vector<1x1x1xf32>
    %45 = vector.extract %44[0, 0, 0] : f32 from vector<1x1x1xf32>
    %46 = vector.shape_cast %41 : vector<2x1xf32> to vector<1x2x1xf32>
    %cst_14 = arith.constant dense<0.000000e+00> : vector<1xf32>
    %47 = vector.multi_reduction <add>, %46, %cst_14 [1, 2] : vector<1x2x1xf32> to vector<1xf32>
    %48 = vector.shape_cast %47 : vector<1xf32> to vector<1x1x1xf32>
    %49 = vector.extract %48[0, 0, 0] : f32 from vector<1x1x1xf32>
    %cst_15 = arith.constant 2.000000e+00 : f32
    %50 = arith.mulf %cst_15, %49 : f32
    %51 = arith.subf %45, %50 : f32
    %cst_16 = arith.constant 4.000000e+00 : f32
    %52 = arith.divf %51, %cst_16 : f32
    %53 = vector.broadcast %52 : f32 to vector<1x1xf32>
    %c0_17 = arith.constant 0 : index
    %c0_18 = arith.constant 0 : index
    %54 = vector.load %arg2[%c0_17, %c0_18] : memref<1x1xf32, #tpu.memory_space<vmem>>, vector<1x1xf32>
    tpu.vector_store %arg2[%c0_17, %c0_18], %53 {strides = array<i32>} : memref<1x1xf32, #tpu.memory_space<vmem>>, vector<1x1xf32>,
    return
  }
}

module attributes {stable_mosaic.version = 11 : i64} {
  func.func @_fused_view_kernel(%arg0: i32, %arg1: memref<1x256x4xbf16, #tpu.memory_space<vmem>>, %arg2: memref<1x256x4xbf16, #tpu.memory_space<vmem>>, %arg3: memref<1x1x256xi32, #tpu.memory_space<vmem>>, %arg4: memref<4x32xbf16, #tpu.memory_space<vmem>>, %arg5: memref<1x32xf32, #tpu.memory_space<vmem>>, %arg6: memref<32x32xbf16, #tpu.memory_space<vmem>>, %arg7: memref<1x32xf32, #tpu.memory_space<vmem>>, %arg8: memref<32x32xbf16, #tpu.memory_space<vmem>>, %arg9: memref<1x32xf32, #tpu.memory_space<vmem>>, %arg10: memref<32x128xbf16, #tpu.memory_space<vmem>>, %arg11: memref<1x128xf32, #tpu.memory_space<vmem>>, %arg12: memref<32x128xbf16, #tpu.memory_space<vmem>>, %arg13: memref<1x128xf32, #tpu.memory_space<vmem>>, %arg14: memref<1x1x128xf32, #tpu.memory_space<vmem>>, %arg15: memref<1x1x128xf32, #tpu.memory_space<vmem>>, %arg16: memref<1x1x1xf32, #tpu.memory_space<vmem>>, %arg17: memref<1x1x1xf32, #tpu.memory_space<vmem>>) attributes {dimension_semantics = [#tpu.dimension_semantics<parallel>], iteration_bounds = array<i64: 2>, scalar_prefetch = 0 : i64, scratch_operands = 0 : i64, tpu.core_type = #tpu.core_type<tc>, window_params = [{transform_indices = @transform_0, window_bounds = array<i64: 1, 256, 4>}, {transform_indices = @transform_1, window_bounds = array<i64: 1, 256, 4>}, {transform_indices = @transform_2, window_bounds = array<i64: 1, 1, 256>}, {pipeline_mode = #tpu.pipeline_mode<synchronous>, transform_indices = @transform_3, window_bounds = array<i64: 4, 32>}, {pipeline_mode = #tpu.pipeline_mode<synchronous>, transform_indices = @transform_4, window_bounds = array<i64: 1, 32>}, {pipeline_mode = #tpu.pipeline_mode<synchronous>, transform_indices = @transform_5, window_bounds = array<i64: 32, 32>}, {pipeline_mode = #tpu.pipeline_mode<synchronous>, transform_indices = @transform_6, window_bounds = array<i64: 1, 32>}, {pipeline_mode = #tpu.pipeline_mode<synchronous>, transform_indices = @transform_7, window_bounds = array<i64: 32, 32>}, {pipeline_mode = #tpu.pipeline_mode<synchronous>, transform_indices = @transform_8, window_bounds = array<i64: 1, 32>}, {pipeline_mode = #tpu.pipeline_mode<synchronous>, transform_indices = @transform_9, window_bounds = array<i64: 32, 128>}, {pipeline_mode = #tpu.pipeline_mode<synchronous>, transform_indices = @transform_10, window_bounds = array<i64: 1, 128>}, {pipeline_mode = #tpu.pipeline_mode<synchronous>, transform_indices = @transform_11, window_bounds = array<i64: 32, 128>}, {pipeline_mode = #tpu.pipeline_mode<synchronous>, transform_indices = @transform_12, window_bounds = array<i64: 1, 128>}, {transform_indices = @transform_13, window_bounds = array<i64: 1, 1, 128>}, {transform_indices = @transform_14, window_bounds = array<i64: 1, 1, 128>}, {transform_indices = @transform_15, window_bounds = array<i64: 1, 1, 1>}, {transform_indices = @transform_16, window_bounds = array<i64: 1, 1, 1>}]} {
    %c0 = arith.constant 0 : index
    %c0_0 = arith.constant 0 : index
    %0 = vector.load %arg4[%c0, %c0_0] : memref<4x32xbf16, #tpu.memory_space<vmem>>, vector<4x32xbf16>
    %c0_1 = arith.constant 0 : index
    %c0_2 = arith.constant 0 : index
    %1 = vector.load %arg5[%c0_1, %c0_2] : memref<1x32xf32, #tpu.memory_space<vmem>>, vector<1x32xf32>
    %c0_3 = arith.constant 0 : index
    %c0_4 = arith.constant 0 : index
    %2 = vector.load %arg6[%c0_3, %c0_4] : memref<32x32xbf16, #tpu.memory_space<vmem>>, vector<32x32xbf16>
    %c0_5 = arith.constant 0 : index
    %c0_6 = arith.constant 0 : index
    %3 = vector.load %arg7[%c0_5, %c0_6] : memref<1x32xf32, #tpu.memory_space<vmem>>, vector<1x32xf32>
    %c0_7 = arith.constant 0 : index
    %c0_8 = arith.constant 0 : index
    %4 = vector.load %arg8[%c0_7, %c0_8] : memref<32x32xbf16, #tpu.memory_space<vmem>>, vector<32x32xbf16>
    %c0_9 = arith.constant 0 : index
    %c0_10 = arith.constant 0 : index
    %5 = vector.load %arg9[%c0_9, %c0_10] : memref<1x32xf32, #tpu.memory_space<vmem>>, vector<1x32xf32>
    %c0_11 = arith.constant 0 : index
    %c0_12 = arith.constant 0 : index
    %6 = vector.load %arg10[%c0_11, %c0_12] : memref<32x128xbf16, #tpu.memory_space<vmem>>, vector<32x128xbf16>
    %c0_13 = arith.constant 0 : index
    %c0_14 = arith.constant 0 : index
    %7 = vector.load %arg11[%c0_13, %c0_14] : memref<1x128xf32, #tpu.memory_space<vmem>>, vector<1x128xf32>
    %c0_15 = arith.constant 0 : index
    %c0_16 = arith.constant 0 : index
    %8 = vector.load %arg12[%c0_15, %c0_16] : memref<32x128xbf16, #tpu.memory_space<vmem>>, vector<32x128xbf16>
    %c0_17 = arith.constant 0 : index
    %c0_18 = arith.constant 0 : index
    %9 = vector.load %arg13[%c0_17, %c0_18] : memref<1x128xf32, #tpu.memory_space<vmem>>, vector<1x128xf32>
    %c0_19 = arith.constant 0 : index
    %c0_20 = arith.constant 0 : index
    %c0_21 = arith.constant 0 : index
    %10 = vector.load %arg3[%c0_19, %c0_20, %c0_21] : memref<1x1x256xi32, #tpu.memory_space<vmem>>, vector<1x1x256xi32>
    %11 = vector.shape_cast %10 : vector<1x1x256xi32> to vector<1x256xi32>
    %12 = tpu.iota {dimensions = array<i32: 0>} : vector<4x256xi32>
    %13 = vector.broadcast %11 : vector<1x256xi32> to vector<4x256xi32>
    %14 = arith.cmpi eq, %13, %12 : vector<4x256xi32>
    %cst = arith.constant 1.000000e+00 : f32
    %cst_22 = arith.constant 0.000000e+00 : f32
    %15 = vector.broadcast %cst : f32 to vector<4x256xf32>
    %16 = vector.broadcast %cst_22 : f32 to vector<4x256xf32>
    %17 = arith.select %14, %15, %16 : vector<4x256xi1>, vector<4x256xf32>
    %cst_23 = arith.constant dense<0.000000e+00> : vector<4xf32>
    %18 = vector.multi_reduction <add>, %17, %cst_23 [1] : vector<4x256xf32> to vector<4xf32>
    %19 = vector.shape_cast %18 : vector<4xf32> to vector<4x1xf32>
    %20 = arith.truncf %17 : vector<4x256xf32> to vector<4x256xbf16>
    %cst_24 = arith.constant 1.000000e+00 : f32
    %21 = vector.broadcast %cst_24 : f32 to vector<4x1xf32>
    %22 = arith.maximumf %19, %21 : vector<4x1xf32>
    %cst_25 = arith.constant 1.000000e+00 : f32
    %23 = vector.broadcast %cst_25 : f32 to vector<4x1xf32>
    %24 = arith.divf %23, %22 : vector<4x1xf32>
    %c0_26 = arith.constant 0 : index
    %c0_27 = arith.constant 0 : index
    %c0_28 = arith.constant 0 : index
    %25 = vector.load %arg1[%c0_26, %c0_27, %c0_28] : memref<1x256x4xbf16, #tpu.memory_space<vmem>>, vector<1x256x4xbf16>
    %26 = vector.shape_cast %25 : vector<1x256x4xbf16> to vector<256x4xbf16>
    %cst_29 = arith.constant dense<0.000000e+00> : vector<256x32xf32>
    %27 = tpu.matmul %26, %0, %cst_29 {dimension_numbers = #tpu.dot_dimension_numbers<[1], [0], [0], [1], [0, 0, 1, 1], [], []>} : vector<256x4xbf16>, vector<4x32xbf16>, vector<256x32xf32> -> vector<256x32xf32>
    %28 = vector.broadcast %1 : vector<1x32xf32> to vector<256x32xf32>
    %29 = arith.addf %27, %28 : vector<256x32xf32>
    %cst_30 = arith.constant 0.000000e+00 : f32
    %30 = vector.broadcast %cst_30 : f32 to vector<256x32xf32>
    %31 = arith.maximumf %29, %30 : vector<256x32xf32>
    %32 = arith.truncf %31 : vector<256x32xf32> to vector<256x32xbf16>
    %cst_31 = arith.constant dense<0.000000e+00> : vector<32xf32>
    %33 = vector.multi_reduction <add>, %31, %cst_31 [0] : vector<256x32xf32> to vector<32xf32>
    %34 = vector.shape_cast %33 : vector<32xf32> to vector<1x32xf32>
    %cst_32 = arith.constant 2.560000e+02 : f32
    %35 = vector.broadcast %cst_32 : f32 to vector<1x32xf32>
    %36 = arith.divf %34, %35 : vector<1x32xf32>
    %37 = arith.truncf %36 : vector<1x32xf32> to vector<1x32xbf16>
    %cst_33 = arith.constant dense<0.000000e+00> : vector<1x32xf32>
    %38 = tpu.matmul %37, %2, %cst_33 {dimension_numbers = #tpu.dot_dimension_numbers<[1], [0], [0], [1], [0, 0, 1, 1], [], []>} : vector<1x32xbf16>, vector<32x32xbf16>, vector<1x32xf32> -> vector<1x32xf32>
    %39 = arith.addf %38, %3 : vector<1x32xf32>
    %cst_34 = arith.constant 0.000000e+00 : f32
    %40 = vector.broadcast %cst_34 : f32 to vector<1x32xf32>
    %41 = arith.maximumf %39, %40 : vector<1x32xf32>
    %42 = arith.truncf %41 : vector<1x32xf32> to vector<1x32xbf16>
    %cst_35 = arith.constant dense<0.000000e+00> : vector<1x32xf32>
    %43 = tpu.matmul %42, %4, %cst_35 {dimension_numbers = #tpu.dot_dimension_numbers<[1], [0], [0], [1], [0, 0, 1, 1], [], []>} : vector<1x32xbf16>, vector<32x32xbf16>, vector<1x32xf32> -> vector<1x32xf32>
    %44 = arith.addf %43, %5 : vector<1x32xf32>
    %cst_36 = arith.constant 0.000000e+00 : f32
    %45 = vector.broadcast %cst_36 : f32 to vector<1x32xf32>
    %46 = arith.maximumf %44, %45 : vector<1x32xf32>
    %47 = arith.truncf %46 : vector<1x32xf32> to vector<1x32xbf16>
    %cst_37 = arith.constant dense<0.000000e+00> : vector<1x128xf32>
    %48 = tpu.matmul %47, %6, %cst_37 {dimension_numbers = #tpu.dot_dimension_numbers<[1], [0], [0], [1], [0, 0, 1, 1], [], []>} : vector<1x32xbf16>, vector<32x128xbf16>, vector<1x128xf32> -> vector<1x128xf32>
    %49 = arith.addf %48, %7 : vector<1x128xf32>
    %cst_38 = arith.constant dense<0.000000e+00> : vector<4x32xf32>
    %50 = tpu.matmul %20, %32, %cst_38 {dimension_numbers = #tpu.dot_dimension_numbers<[1], [0], [0], [1], [0, 0, 1, 1], [], []>} : vector<4x256xbf16>, vector<256x32xbf16>, vector<4x32xf32> -> vector<4x32xf32>
    %51 = vector.broadcast %24 : vector<4x1xf32> to vector<4x32xf32>
    %52 = arith.mulf %50, %51 : vector<4x32xf32>
    %53 = arith.truncf %52 : vector<4x32xf32> to vector<4x32xbf16>
    %cst_39 = arith.constant dense<0.000000e+00> : vector<4x128xf32>
    %54 = tpu.matmul %53, %8, %cst_39 {dimension_numbers = #tpu.dot_dimension_numbers<[1], [0], [0], [1], [0, 0, 1, 1], [], []>} : vector<4x32xbf16>, vector<32x128xbf16>, vector<4x128xf32> -> vector<4x128xf32>
    %55 = vector.broadcast %9 : vector<1x128xf32> to vector<4x128xf32>
    %56 = arith.addf %54, %55 : vector<4x128xf32>
    %c0_40 = arith.constant 0 : index
    %c0_41 = arith.constant 0 : index
    %c0_42 = arith.constant 0 : index
    %57 = vector.load %arg2[%c0_40, %c0_41, %c0_42] : memref<1x256x4xbf16, #tpu.memory_space<vmem>>, vector<1x256x4xbf16>
    %58 = vector.shape_cast %57 : vector<1x256x4xbf16> to vector<256x4xbf16>
    %cst_43 = arith.constant dense<0.000000e+00> : vector<256x32xf32>
    %59 = tpu.matmul %58, %0, %cst_43 {dimension_numbers = #tpu.dot_dimension_numbers<[1], [0], [0], [1], [0, 0, 1, 1], [], []>} : vector<256x4xbf16>, vector<4x32xbf16>, vector<256x32xf32> -> vector<256x32xf32>
    %60 = vector.broadcast %1 : vector<1x32xf32> to vector<256x32xf32>
    %61 = arith.addf %59, %60 : vector<256x32xf32>
    %cst_44 = arith.constant 0.000000e+00 : f32
    %62 = vector.broadcast %cst_44 : f32 to vector<256x32xf32>
    %63 = arith.maximumf %61, %62 : vector<256x32xf32>
    %64 = arith.truncf %63 : vector<256x32xf32> to vector<256x32xbf16>
    %cst_45 = arith.constant dense<0.000000e+00> : vector<32xf32>
    %65 = vector.multi_reduction <add>, %63, %cst_45 [0] : vector<256x32xf32> to vector<32xf32>
    %66 = vector.shape_cast %65 : vector<32xf32> to vector<1x32xf32>
    %cst_46 = arith.constant 2.560000e+02 : f32
    %67 = vector.broadcast %cst_46 : f32 to vector<1x32xf32>
    %68 = arith.divf %66, %67 : vector<1x32xf32>
    %69 = arith.truncf %68 : vector<1x32xf32> to vector<1x32xbf16>
    %cst_47 = arith.constant dense<0.000000e+00> : vector<1x32xf32>
    %70 = tpu.matmul %69, %2, %cst_47 {dimension_numbers = #tpu.dot_dimension_numbers<[1], [0], [0], [1], [0, 0, 1, 1], [], []>} : vector<1x32xbf16>, vector<32x32xbf16>, vector<1x32xf32> -> vector<1x32xf32>
    %71 = arith.addf %70, %3 : vector<1x32xf32>
    %cst_48 = arith.constant 0.000000e+00 : f32
    %72 = vector.broadcast %cst_48 : f32 to vector<1x32xf32>
    %73 = arith.maximumf %71, %72 : vector<1x32xf32>
    %74 = arith.truncf %73 : vector<1x32xf32> to vector<1x32xbf16>
    %cst_49 = arith.constant dense<0.000000e+00> : vector<1x32xf32>
    %75 = tpu.matmul %74, %4, %cst_49 {dimension_numbers = #tpu.dot_dimension_numbers<[1], [0], [0], [1], [0, 0, 1, 1], [], []>} : vector<1x32xbf16>, vector<32x32xbf16>, vector<1x32xf32> -> vector<1x32xf32>
    %76 = arith.addf %75, %5 : vector<1x32xf32>
    %cst_50 = arith.constant 0.000000e+00 : f32
    %77 = vector.broadcast %cst_50 : f32 to vector<1x32xf32>
    %78 = arith.maximumf %76, %77 : vector<1x32xf32>
    %79 = arith.truncf %78 : vector<1x32xf32> to vector<1x32xbf16>
    %cst_51 = arith.constant dense<0.000000e+00> : vector<1x128xf32>
    %80 = tpu.matmul %79, %6, %cst_51 {dimension_numbers = #tpu.dot_dimension_numbers<[1], [0], [0], [1], [0, 0, 1, 1], [], []>} : vector<1x32xbf16>, vector<32x128xbf16>, vector<1x128xf32> -> vector<1x128xf32>
    %81 = arith.addf %80, %7 : vector<1x128xf32>
    %cst_52 = arith.constant dense<0.000000e+00> : vector<4x32xf32>
    %82 = tpu.matmul %20, %64, %cst_52 {dimension_numbers = #tpu.dot_dimension_numbers<[1], [0], [0], [1], [0, 0, 1, 1], [], []>} : vector<4x256xbf16>, vector<256x32xbf16>, vector<4x32xf32> -> vector<4x32xf32>
    %83 = vector.broadcast %24 : vector<4x1xf32> to vector<4x32xf32>
    %84 = arith.mulf %82, %83 : vector<4x32xf32>
    %85 = arith.truncf %84 : vector<4x32xf32> to vector<4x32xbf16>
    %cst_53 = arith.constant dense<0.000000e+00> : vector<4x128xf32>
    %86 = tpu.matmul %85, %8, %cst_53 {dimension_numbers = #tpu.dot_dimension_numbers<[1], [0], [0], [1], [0, 0, 1, 1], [], []>} : vector<4x32xbf16>, vector<32x128xbf16>, vector<4x128xf32> -> vector<4x128xf32>
    %87 = vector.broadcast %9 : vector<1x128xf32> to vector<4x128xf32>
    %88 = arith.addf %86, %87 : vector<4x128xf32>
    %89 = vector.shape_cast %49 : vector<1x128xf32> to vector<1x1x128xf32>
    %c0_54 = arith.constant 0 : index
    %c0_55 = arith.constant 0 : index
    %c0_56 = arith.constant 0 : index
    %90 = vector.load %arg14[%c0_54, %c0_55, %c0_56] : memref<1x1x128xf32, #tpu.memory_space<vmem>>, vector<1x1x128xf32>
    tpu.vector_store %arg14[%c0_54, %c0_55, %c0_56], %89 {strides = array<i32>} : memref<1x1x128xf32, #tpu.memory_space<vmem>>, vector<1x1x128xf32>,
    %91 = vector.shape_cast %81 : vector<1x128xf32> to vector<1x1x128xf32>
    %c0_57 = arith.constant 0 : index
    %c0_58 = arith.constant 0 : index
    %c0_59 = arith.constant 0 : index
    %92 = vector.load %arg15[%c0_57, %c0_58, %c0_59] : memref<1x1x128xf32, #tpu.memory_space<vmem>>, vector<1x1x128xf32>
    tpu.vector_store %arg15[%c0_57, %c0_58, %c0_59], %91 {strides = array<i32>} : memref<1x1x128xf32, #tpu.memory_space<vmem>>, vector<1x1x128xf32>,
    %93 = tpu.concatenate %56, %88 in 0 : vector<4x128xf32>, vector<4x128xf32> -> vector<8x128xf32>
    %94 = arith.mulf %93, %93 : vector<8x128xf32>
    %cst_60 = arith.constant dense<0.000000e+00> : vector<8xf32>
    %95 = vector.multi_reduction <add>, %94, %cst_60 [1] : vector<8x128xf32> to vector<8xf32>
    %96 = vector.shape_cast %95 : vector<8xf32> to vector<8x1xf32>
    %cst_61 = arith.constant 1.000000e-24 : f32
    %97 = vector.broadcast %cst_61 : f32 to vector<8x1xf32>
    %98 = arith.maximumf %96, %97 : vector<8x1xf32>
    %99 = math.rsqrt %98 : vector<8x1xf32>
    %100 = vector.broadcast %99 : vector<8x1xf32> to vector<8x128xf32>
    %101 = arith.mulf %93, %100 : vector<8x128xf32>
    %102 = arith.truncf %101 : vector<8x128xf32> to vector<8x128xbf16>
    %cst_62 = arith.constant dense<0.000000e+00> : vector<8x8xf32>
    %103 = tpu.matmul %102, %102, %cst_62 {dimension_numbers = #tpu.dot_dimension_numbers<[1], [1], [0], [0], [0, 0, 1, 0], [], []>} : vector<8x128xbf16>, vector<8x128xbf16>, vector<8x8xf32> -> vector<8x8xf32>
    %cst_63 = arith.constant 2.000000e+00 : f32
    %104 = vector.broadcast %cst_63 : f32 to vector<8x8xf32>
    %105 = arith.mulf %103, %104 : vector<8x8xf32>
    %106 = tpu.iota {dimensions = array<i32: 0>} : vector<8x8xi32>
    %107 = tpu.iota {dimensions = array<i32: 1>} : vector<8x8xi32>
    %108 = arith.cmpi eq, %106, %107 : vector<8x8xi32>
    %cst_64 = arith.constant -1.000000e+30 : f32
    %109 = vector.broadcast %cst_64 : f32 to vector<8x8xf32>
    %110 = arith.select %108, %109, %105 : vector<8x8xi1>, vector<8x8xf32>
    %cst_65 = arith.constant dense<0xFF800000> : vector<8xf32>
    %111 = vector.multi_reduction <maximumf>, %110, %cst_65 [1] : vector<8x8xf32> to vector<8xf32>
    %112 = vector.shape_cast %111 : vector<8xf32> to vector<8x1xf32>
    %113 = vector.broadcast %112 : vector<8x1xf32> to vector<8x8xf32>
    %114 = arith.subf %110, %113 : vector<8x8xf32>
    %115 = math.exp %114 : vector<8x8xf32>
    %cst_66 = arith.constant dense<0.000000e+00> : vector<8xf32>
    %116 = vector.multi_reduction <add>, %115, %cst_66 [1] : vector<8x8xf32> to vector<8xf32>
    %117 = vector.shape_cast %116 : vector<8xf32> to vector<8x1xf32>
    %118 = math.log %117 : vector<8x1xf32>
    %119 = arith.addf %112, %118 : vector<8x1xf32>
    %120 = vector.extract_strided_slice %101 {offsets = [0, 0], sizes = [4, 128], strides = [1, 1]} : vector<8x128xf32> to vector<4x128xf32>
    %121 = vector.extract_strided_slice %101 {offsets = [4, 0], sizes = [4, 128], strides = [1, 1]} : vector<8x128xf32> to vector<4x128xf32>
    %122 = arith.mulf %120, %121 : vector<4x128xf32>
    %cst_67 = arith.constant dense<0.000000e+00> : vector<4xf32>
    %123 = vector.multi_reduction <add>, %122, %cst_67 [1] : vector<4x128xf32> to vector<4xf32>
    %124 = vector.shape_cast %123 : vector<4xf32> to vector<4x1xf32>
    %cst_68 = arith.constant 2.000000e+00 : f32
    %125 = vector.broadcast %cst_68 : f32 to vector<4x1xf32>
    %126 = arith.mulf %124, %125 : vector<4x1xf32>
    %127 = tpu.concatenate %126, %126 in 0 : vector<4x1xf32>, vector<4x1xf32> -> vector<8x1xf32>
    %128 = tpu.concatenate %19, %19 in 0 : vector<4x1xf32>, vector<4x1xf32> -> vector<8x1xf32>
    %cst_69 = arith.constant 0.000000e+00 : f32
    %129 = vector.broadcast %cst_69 : f32 to vector<8x1xf32>
    %130 = arith.cmpf ogt, %128, %129 : vector<8x1xf32>
    %131 = arith.subf %119, %127 : vector<8x1xf32>
    %cst_70 = arith.constant 0.000000e+00 : f32
    %132 = vector.broadcast %cst_70 : f32 to vector<8x1xf32>
    %133 = arith.select %130, %131, %132 : vector<8x1xi1>, vector<8x1xf32>
    %134 = vector.shape_cast %133 : vector<8x1xf32> to vector<1x8x1xf32>
    %cst_71 = arith.constant dense<0.000000e+00> : vector<1xf32>
    %135 = vector.multi_reduction <add>, %134, %cst_71 [1, 2] : vector<1x8x1xf32> to vector<1xf32>
    %136 = vector.shape_cast %135 : vector<1xf32> to vector<1x1x1xf32>
    %137 = vector.extract %136[0, 0, 0] : f32 from vector<1x1x1xf32>
    %138 = vector.broadcast %137 : f32 to vector<1x1x1xf32>
    %c0_72 = arith.constant 0 : index
    %c0_73 = arith.constant 0 : index
    %c0_74 = arith.constant 0 : index
    %139 = vector.load %arg16[%c0_72, %c0_73, %c0_74] : memref<1x1x1xf32, #tpu.memory_space<vmem>>, vector<1x1x1xf32>
    tpu.vector_store %arg16[%c0_72, %c0_73, %c0_74], %138 {strides = array<i32>} : memref<1x1x1xf32, #tpu.memory_space<vmem>>, vector<1x1x1xf32>,
    %140 = arith.extui %130 : vector<8x1xi1> to vector<8x1xi32>
    %141 = arith.sitofp %140 : vector<8x1xi32> to vector<8x1xf32>
    %142 = vector.shape_cast %141 : vector<8x1xf32> to vector<1x8x1xf32>
    %cst_75 = arith.constant dense<0.000000e+00> : vector<1xf32>
    %143 = vector.multi_reduction <add>, %142, %cst_75 [1, 2] : vector<1x8x1xf32> to vector<1xf32>
    %144 = vector.shape_cast %143 : vector<1xf32> to vector<1x1x1xf32>
    %145 = vector.extract %144[0, 0, 0] : f32 from vector<1x1x1xf32>
    %146 = vector.broadcast %145 : f32 to vector<1x1x1xf32>
    %c0_76 = arith.constant 0 : index
    %c0_77 = arith.constant 0 : index
    %c0_78 = arith.constant 0 : index
    %147 = vector.load %arg17[%c0_76, %c0_77, %c0_78] : memref<1x1x1xf32, #tpu.memory_space<vmem>>, vector<1x1x1xf32>
    tpu.vector_store %arg17[%c0_76, %c0_77, %c0_78], %146 {strides = array<i32>} : memref<1x1x1xf32, #tpu.memory_space<vmem>>, vector<1x1x1xf32>,
    return
  }
  func.func @transform_0(%arg0: i32) -> (i32, i32, i32) {
    %c0_i32 = arith.constant 0 : i32
    %c0_i32_0 = arith.constant 0 : i32
    %c0_i32_1 = arith.constant 0 : i32
    return %arg0, %c0_i32, %c0_i32_0 : i32, i32, i32
  }
  func.func @transform_1(%arg0: i32) -> (i32, i32, i32) {
    %c0_i32 = arith.constant 0 : i32
    %c0_i32_0 = arith.constant 0 : i32
    %c0_i32_1 = arith.constant 0 : i32
    return %arg0, %c0_i32, %c0_i32_0 : i32, i32, i32
  }
  func.func @transform_2(%arg0: i32) -> (i32, i32, i32) {
    %c0_i32 = arith.constant 0 : i32
    %c0_i32_0 = arith.constant 0 : i32
    %c0_i32_1 = arith.constant 0 : i32
    return %arg0, %c0_i32, %c0_i32_0 : i32, i32, i32
  }
  func.func @transform_3(%arg0: i32) -> (i32, i32) {
    %c0_i32 = arith.constant 0 : i32
    %c0_i32_0 = arith.constant 0 : i32
    %c0_i32_1 = arith.constant 0 : i32
    return %c0_i32, %c0_i32_0 : i32, i32
  }
  func.func @transform_4(%arg0: i32) -> (i32, i32) {
    %c0_i32 = arith.constant 0 : i32
    %c0_i32_0 = arith.constant 0 : i32
    %c0_i32_1 = arith.constant 0 : i32
    return %c0_i32, %c0_i32_0 : i32, i32
  }
  func.func @transform_5(%arg0: i32) -> (i32, i32) {
    %c0_i32 = arith.constant 0 : i32
    %c0_i32_0 = arith.constant 0 : i32
    %c0_i32_1 = arith.constant 0 : i32
    return %c0_i32, %c0_i32_0 : i32, i32
  }
  func.func @transform_6(%arg0: i32) -> (i32, i32) {
    %c0_i32 = arith.constant 0 : i32
    %c0_i32_0 = arith.constant 0 : i32
    %c0_i32_1 = arith.constant 0 : i32
    return %c0_i32, %c0_i32_0 : i32, i32
  }
  func.func @transform_7(%arg0: i32) -> (i32, i32) {
    %c0_i32 = arith.constant 0 : i32
    %c0_i32_0 = arith.constant 0 : i32
    %c0_i32_1 = arith.constant 0 : i32
    return %c0_i32, %c0_i32_0 : i32, i32
  }
  func.func @transform_8(%arg0: i32) -> (i32, i32) {
    %c0_i32 = arith.constant 0 : i32
    %c0_i32_0 = arith.constant 0 : i32
    %c0_i32_1 = arith.constant 0 : i32
    return %c0_i32, %c0_i32_0 : i32, i32
  }
  func.func @transform_9(%arg0: i32) -> (i32, i32) {
    %c0_i32 = arith.constant 0 : i32
    %c0_i32_0 = arith.constant 0 : i32
    %c0_i32_1 = arith.constant 0 : i32
    return %c0_i32, %c0_i32_0 : i32, i32
  }
  func.func @transform_10(%arg0: i32) -> (i32, i32) {
    %c0_i32 = arith.constant 0 : i32
    %c0_i32_0 = arith.constant 0 : i32
    %c0_i32_1 = arith.constant 0 : i32
    return %c0_i32, %c0_i32_0 : i32, i32
  }
  func.func @transform_11(%arg0: i32) -> (i32, i32) {
    %c0_i32 = arith.constant 0 : i32
    %c0_i32_0 = arith.constant 0 : i32
    %c0_i32_1 = arith.constant 0 : i32
    return %c0_i32, %c0_i32_0 : i32, i32
  }
  func.func @transform_12(%arg0: i32) -> (i32, i32) {
    %c0_i32 = arith.constant 0 : i32
    %c0_i32_0 = arith.constant 0 : i32
    %c0_i32_1 = arith.constant 0 : i32
    return %c0_i32, %c0_i32_0 : i32, i32
  }
  func.func @transform_13(%arg0: i32) -> (i32, i32, i32) {
    %c0_i32 = arith.constant 0 : i32
    %c0_i32_0 = arith.constant 0 : i32
    %c0_i32_1 = arith.constant 0 : i32
    return %arg0, %c0_i32, %c0_i32_0 : i32, i32, i32
  }
  func.func @transform_14(%arg0: i32) -> (i32, i32, i32) {
    %c0_i32 = arith.constant 0 : i32
    %c0_i32_0 = arith.constant 0 : i32
    %c0_i32_1 = arith.constant 0 : i32
    return %arg0, %c0_i32, %c0_i32_0 : i32, i32, i32
  }
  func.func @transform_15(%arg0: i32) -> (i32, i32, i32) {
    %c0_i32 = arith.constant 0 : i32
    %c0_i32_0 = arith.constant 0 : i32
    %c0_i32_1 = arith.constant 0 : i32
    return %arg0, %c0_i32, %c0_i32_0 : i32, i32, i32
  }
  func.func @transform_16(%arg0: i32) -> (i32, i32, i32) {
    %c0_i32 = arith.constant 0 : i32
    %c0_i32_0 = arith.constant 0 : i32
    %c0_i32_1 = arith.constant 0 : i32
    return %arg0, %c0_i32, %c0_i32_0 : i32, i32, i32
  }
}

</mosaic_0001>

<llo_original>
// kernel: forward.3
$region0: #{forward.3}
  #allocation0 [shape = 'u32[]', space=smem, size = 0x4, offset = 0x4, fixed_abs, tag = 'smem constant byte address 0x4 - core index']
  #allocation1 [shape = 'u32[144,128]{1,0:T(1,128)}', space=vmem, size = 0x12000, scoped, tag = 'internal scratch']
  %s0 = inlined_call_operand.vmem [shape: f32[2,128], index: 0, kind: input, shape index: {}]
  %s1 = inlined_call_operand.vmem [shape: f32[2,128], index: 1, kind: input, shape index: {}]
  %s2 = inlined_call_operand.hbm [shape: f32[1,1], index: 2, kind: output, shape index: {}]
  %s3 = sld [smem:[#allocation0]]
  $region18: #{forward.3} parent=0
    _
  %s5 = ssub.s32 1, %s3
  %s6 = scalar_select 0, %s5, %s3
  $region1: #{forward.3} parent=0
    #allocation2 [shape = 'u8[512]{0}', space=vmem, size = 0x400, scoped, tag = 'output window, operand 0, single buffered']
    #allocation3 [shape = 's32[1]{0}', space=sflag, size = 0x4, scoped, tag = 'scoped memory for forward.3']
    %7 = vsyncpa [#allocation3], 0
    // Predicated region
    $region2: #{forward.3} parent=1 // pred_check
      _
    $region3: #{forward.3} parent=1 // pred_check_branch
      %9 = sbr.rel (0) target = $region5
    $region4: #{forward.3} parent=1 // pred_region
      _
    $region5: #{forward.3} parent=1 // pred_fallthru
      _
    // Predicated region
    $region6: #{forward.3} parent=1 // pred_check
      _
    $region7: #{forward.3} parent=1 // pred_check_branch
      %11 = sbr.rel (0) target = $region9
    $region8: #{forward.3} parent=1 // pred_region
      _
    $region9: #{forward.3} parent=1 // pred_fallthru
      _
    %v13 = vld [vmem:[%s0] sm:$0x3]
    %v14 = vld [vmem:[%s1] sm:$0x3]
    %v15 = vmul.f32 %v13, %v13
    %vm16 = vcmask 1041408
    %v17 = vsel %vm16, %v15, 0.0
    %18 = vadd.xlane.f32.xlu0 %v17
    %v19 = vpop.xlane.xlu0 %18
    %v20 = vmax.f32 %v19, 1e-24
    %v21 = vrsqrt.pop %v20
    %v22 = vmul.f32 %v13, %v21
    %v23 = vmul.f32 %v14, %v14
    %v24 = vsel %vm16, %v23, 0.0
    %25 = vadd.xlane.f32.xlu0 %v24
    %v26 = vpop.xlane.xlu0 %25
    %v27 = vmax.f32 %v26, 1e-24
    %v28 = vrsqrt.pop %v27
    %v29 = vmul.f32 %v14, %v28
    %v31 = vrot.slane %v29, 6
    %v33 = vsel %vm16, %v22, %v31
    %v34 = vpack.c.bf16 %v33, %v33
    %35 = vmatprep.subr.bf16.mxu0 0
    %36 = vmatpush1.bf16.xpose.msra.mxu0 %v34
    %37 = vmatprep.subr.bf16.mxu0 0
    %38 = vmatpush1.bf16.xpose.msra.mxu0 0
    %39 = vmatprep.subr.bf16.mxu0 0
    %40 = vmatpush1.bf16.xpose.msra.mxu0 0
    %41 = vmatprep.subr.bf16.mxu0 0
    %42 = vmatpush1.bf16.xpose.msra.mxu0 0
    %43 = vmatprep.subr.bf16.mxu0 0
    %44 = vmatpush1.bf16.xpose.msra.mxu0 0
    %45 = vmatprep.subr.bf16.mxu0 0
    %46 = vmatpush1.bf16.xpose.msra.mxu0 0
    %47 = vmatprep.subr.bf16.mxu0 0
    %48 = vmatpush1.bf16.xpose.msra.mxu0 0
    %49 = vmatprep.subr.bf16.mxu0 0
    %50 = vmatpush1.bf16.xpose.msra.mxu0 0
    %51 = vmatprep.subr.bf16.mxu0 0
    %52 = vmatpush1.bf16.xpose.msra.mxu0 0
    %53 = vmatprep.subr.bf16.mxu0 0
    %54 = vmatpush1.bf16.xpose.msra.mxu0 0
    %55 = vmatprep.subr.bf16.mxu0 0
    %56 = vmatpush1.bf16.xpose.msra.mxu0 0
    %57 = vmatprep.subr.bf16.mxu0 0
    %58 = vmatpush1.bf16.xpose.msra.mxu0 0
    %59 = vmatprep.subr.bf16.mxu0 0
    %60 = vmatpush1.bf16.xpose.msra.mxu0 0
    %61 = vmatprep.subr.bf16.mxu0 0
    %62 = vmatpush1.bf16.xpose.msra.mxu0 0
    %63 = vmatprep.subr.bf16.mxu0 0
    %64 = vmatpush1.bf16.xpose.msra.mxu0 0
    %65 = vmatprep.subr.bf16.mxu0 0
    %66 = vmatpush1.bf16.xpose.msra.mxu0 0
    %67 = vmatprep.mubr.bf16.mxu0 0
    %68 = vmatmul.mubr.bf16.gmra.mrb[0].mxu0 %v34
    %v69 = vpop.f32.mrb[0].mxu0
    %v70 = vadd.f32 0.0, %v69
    %v71 = vpop.f32.mrb[0].mxu0
    %v72 = vpop.f32.mrb[0].mxu0
    %v73 = vpop.f32.mrb[0].mxu0
    %74 = vdwg.mxu0
    %v75 = vmul.f32 %v70, 2.0
    %v76 = vlaneseq
    %v77 = vshrl.u32 %v76, 7
    %v78 = vlaneseq
    %v79 = vand.u32 %v78, 127
    %vm80 = vcmp.eq.s32.totalorder %v77, %v79
    %v81 = vsel %vm80, -1e+30, %v75
    %vm82 = vcmask 27648
    %v83 = vsel %vm82, %v81, -inf
    %84 = vmax.xlane.f32.xlu0 %v83
    %v85 = vpop.xlane.xlu0 %84
    %v86 = vsub.f32 %v81, %v85
    %v87 = vmul.f32 %v86, 1.442695
    %v88 = vpow.pop %v87
    %v89 = vsel %vm82, %v88, 0.0
    %90 = vadd.xlane.f32.xlu0 %v89
    %v91 = vpop.xlane.xlu0 %90
    %v92 = vlog2.pop %v91
    %v93 = vmul.f32 %v92, 0.6931472
    %v94 = vadd.f32 %v85, %v93
    %v95 = vmul.f32 %v22, %v29
    %v96 = vsel %vm16, %v95, 0.0
    %97 = vadd.xlane.f32.xlu0 %v96
    %v98 = vpop.xlane.xlu0 %97
    %v99 = vmul.f32 %v98, 2.0
    %vm100 = vcmask 3072
    %v101 = vsel %vm100, %v94, 0.0
    %102 = vadd.xlane.f32.xlu0 %v101
    %v103 = vpop.xlane.xlu0 %102
    %v104 = vrot.slane %v103, 4
    %v105 = vadd.f32 %v103, %v104
    %v106 = vrot.slane %v105, 2
    %v107 = vadd.f32 %v105, %v106
    %v108 = vrot.slane %v107, 1
    %v109 = vadd.f32 %v107, %v108
    %s110 = vtos %v109
    %vm111 = vcmask 1024
    %v112 = vsel %vm111, %v99, 0.0
    %113 = vadd.xlane.f32.xlu0 %v112
    %v114 = vpop.xlane.xlu0 %113
    %v115 = vrot.slane %v114, 4
    %v116 = vadd.f32 %v114, %v115
    %v117 = vrot.slane %v116, 2
    %v118 = vadd.f32 %v116, %v117
    %v119 = vrot.slane %v118, 1
    %v120 = vadd.f32 %v118, %v119
    %s121 = vtos %v120
    %s122 = smul.f32 %s121, 2.0
    %s123 = ssub.f32 %s110, %s122
    %v124 = vrcp.pop 4.0
    %s125 = vtos %v124
    %s126 = smul.f32 %s123, %s125
    %v127 = vstv %s126
    %vm128 = vcmask 0
    %129 = vst.msk [vmem:[#allocation2] sm:$0x1] %vm128, %v127
    // Predicated region
    $region10: #{forward.3} parent=1 // pred_check
      _
    $region11: #{forward.3} parent=1 // pred_check_branch
      %131 = sbr.rel (0) target = $region13
    $region12: #{forward.3} parent=1 // pred_region
      %s133 = ssub.s32 16, 16
      %134 = vsyncadd [#allocation3], %s133
      %s136 = sshll.u32 [#allocation2], 4
      %s137 = int_to_ptr.vmem [resolvable:$true] %s136
      %139 = dma.vmem_to_hbm [thread:$0]  %s137, 16, %s2, [#allocation3]
    $region13: #{forward.3} parent=1 // pred_fallthru
      _
    // Predicated region
    $region14: #{forward.3} parent=1 // pred_check
      _
    $region15: #{forward.3} parent=1 // pred_check_branch
      %141 = sbr.rel (0) target = $region17
    $region16: #{forward.3} parent=1 // pred_region
      %142 = dma.done [#allocation3], 16
    $region17: #{forward.3} parent=1 // pred_fallthru
      _
    %143 = vsyncpa [#allocation3], 1

// kernel: forward.2
$region0: #{forward.2}
  #allocation0 [shape = 'u32[]', space=smem, size = 0x4, offset = 0x4, fixed_abs, tag = 'smem constant byte address 0x4 - core index']
  #allocation1 [shape = 'u32[144,128]{1,0:T(1,128)}', space=vmem, size = 0x12000, scoped, tag = 'internal scratch']
  %s0 = inlined_call_operand.vmem [shape: bf16[2,256,4], index: 0, kind: input, shape index: {}]
  %s1 = inlined_call_operand.vmem [shape: bf16[2,256,4], index: 1, kind: input, shape index: {}]
  %s2 = inlined_call_operand.vmem [shape: s32[2,1,256], index: 2, kind: input, shape index: {}]
  %s3 = inlined_call_operand.vmem [shape: bf16[4,32], index: 3, kind: input, shape index: {}]
  %s4 = inlined_call_operand.vmem [shape: f32[1,32], index: 4, kind: input, shape index: {}]
  %s5 = inlined_call_operand.vmem [shape: bf16[32,32], index: 5, kind: input, shape index: {}]
  %s6 = inlined_call_operand.vmem [shape: f32[1,32], index: 6, kind: input, shape index: {}]
  %s7 = inlined_call_operand.vmem [shape: bf16[32,32], index: 7, kind: input, shape index: {}]
  %s8 = inlined_call_operand.vmem [shape: f32[1,32], index: 8, kind: input, shape index: {}]
  %s9 = inlined_call_operand.vmem [shape: bf16[32,128], index: 9, kind: input, shape index: {}]
  %s10 = inlined_call_operand.vmem [shape: f32[1,128], index: 10, kind: input, shape index: {}]
  %s11 = inlined_call_operand.vmem [shape: bf16[32,128], index: 11, kind: input, shape index: {}]
  %s12 = inlined_call_operand.vmem [shape: f32[1,128], index: 12, kind: input, shape index: {}]
  %s13 = inlined_call_operand.vmem [shape: f32[2,1,128], index: 13, kind: output, shape index: {0}]
  %s14 = inlined_call_operand.vmem [shape: f32[2,1,128], index: 14, kind: output, shape index: {1}]
  %s15 = inlined_call_operand.vmem [shape: f32[2,1,1], index: 15, kind: output, shape index: {2}]
  %s16 = inlined_call_operand.vmem [shape: f32[2,1,1], index: 16, kind: output, shape index: {3}]
  %17 = xla_tuple %s13, %s14, %s15, %s16
  %s18 = sld [smem:[#allocation0]]
  $region109: #{forward.2} parent=0
    _
  %s20 = ssub.s32 1, %s18
  %s21 = scalar_select 0, %s20, %s18
  loop: start=0, step=1, limit=4
  $region2: #{forward.2} parent=0 // loop_pre_header
    _
  $region3: #{forward.2} parent=0 // loop_header
    %s23 = sphi 0, %s27
    %p24 = scmp.ge.s32.totalorder %s23, 4
    %s33 = sphi 0, %s35
    %s36 = sphi 0, %s33
    %s37 = sphi 0, %s36
    %s53 = sphi 0, %s37
    %s59 = sphi 0, %s61
    %s62 = sphi 0, %s59
    %s63 = sphi 0, %s62
    %s79 = sphi 0, %s63
    %s85 = sphi 0, %s87
    %s88 = sphi 0, %s85
    %s89 = sphi 0, %s88
    %s105 = sphi 0, %s89
    %s109 = sphi 0, %s109
    %s111 = sphi 0, %s109
    %s112 = sphi 0, %s111
    %s126 = sphi 0, %s112
    %s130 = sphi 0, %s130
    %s132 = sphi 0, %s130
    %s133 = sphi 0, %s132
    %s147 = sphi 0, %s133
    %s151 = sphi 0, %s151
    %s153 = sphi 0, %s151
    %s154 = sphi 0, %s153
    %s168 = sphi 0, %s154
    %s172 = sphi 0, %s172
    %s174 = sphi 0, %s172
    %s175 = sphi 0, %s174
    %s189 = sphi 0, %s175
    %s193 = sphi 0, %s193
    %s195 = sphi 0, %s193
    %s196 = sphi 0, %s195
    %s210 = sphi 0, %s196
    %s214 = sphi 0, %s214
    %s216 = sphi 0, %s214
    %s217 = sphi 0, %s216
    %s231 = sphi 0, %s217
    %s235 = sphi 0, %s235
    %s237 = sphi 0, %s235
    %s238 = sphi 0, %s237
    %s252 = sphi 0, %s238
    %s256 = sphi 0, %s256
    %s258 = sphi 0, %s256
    %s259 = sphi 0, %s258
    %s273 = sphi 0, %s259
    %s277 = sphi 0, %s277
    %s279 = sphi 0, %s277
    %s280 = sphi 0, %s279
    %s294 = sphi 0, %s280
    %s298 = sphi 0, %s298
    %s300 = sphi 0, %s298
    %s301 = sphi 0, %s300
    %s315 = sphi 0, %s301
    %s321 = sphi 0, %s323
    %s324 = sphi 0, %s321
    %s325 = sphi 0, %s324
    %s341 = sphi 0, %s325
    %s347 = sphi 0, %s349
    %s350 = sphi 0, %s347
    %s351 = sphi 0, %s350
    %s367 = sphi 0, %s351
    %s373 = sphi 0, %s375
    %s376 = sphi 0, %s373
    %s377 = sphi 0, %s376
    %s393 = sphi 0, %s377
    %s399 = sphi 0, %s401
    %s402 = sphi 0, %s399
    %s403 = sphi 0, %s402
    %s419 = sphi 0, %s403
  $region4: #{forward.2} parent=0 // loop_header_branch
    %26 = sbr.rel (%p24) target = $region8
  $region5: #{forward.2} parent=0 // loop_body
    %s28 = ssub.s32 %s23, 1
    %s29 = ssub.s32 %s23, 2
    %s30 = sadd.s32 %s23, 1
    %s31 = ssub.s32 %s23, %s30
    %p32 = scmp.eq.s32.totalorder %s31, 0
    %s34 = sadd.s32 %s33, 1
    %s35 = scalar_select %p32, %s33, %s34
    %p38 = pneg %p32
    %p39 = scmp.eq.s32.totalorder %s23, 1
    %p40 = por %p38, %p39
    %p41 = scmp.ne.s32.totalorder %s33, %s36
    %p42 = scmp.eq.s32.totalorder %s23, 0
    %p43 = por %p41, %p42
    %p44 = scmp.ne.s32.totalorder %s33, %s36
    %p45 = scmp.eq.s32.totalorder %s28, 1
    %p46 = por %p44, %p45
    %p47 = scmp.ne.s32.totalorder %s36, %s37
    %p48 = scmp.eq.s32.totalorder %s28, 0
    %p49 = por %p47, %p48
    %p50 = scmp.ne.s32.totalorder %s36, %s37
    %p51 = scmp.eq.s32.totalorder %s29, 1
    %p52 = por %p50, %p51
    %p54 = scmp.ne.s32.totalorder %s37, %s53
    %p55 = scmp.eq.s32.totalorder %s29, 0
    %p56 = por %p54, %p55
    %s57 = ssub.s32 %s23, %s30
    %p58 = scmp.eq.s32.totalorder %s57, 0
    %s60 = sadd.s32 %s59, 1
    %s61 = scalar_select %p58, %s59, %s60
    %p64 = pneg %p58
    %p65 = scmp.eq.s32.totalorder %s23, 1
    %p66 = por %p64, %p65
    %p67 = scmp.ne.s32.totalorder %s59, %s62
    %p68 = scmp.eq.s32.totalorder %s23, 0
    %p69 = por %p67, %p68
    %p70 = scmp.ne.s32.totalorder %s59, %s62
    %p71 = scmp.eq.s32.totalorder %s28, 1
    %p72 = por %p70, %p71
    %p73 = scmp.ne.s32.totalorder %s62, %s63
    %p74 = scmp.eq.s32.totalorder %s28, 0
    %p75 = por %p73, %p74
    %p76 = scmp.ne.s32.totalorder %s62, %s63
    %p77 = scmp.eq.s32.totalorder %s29, 1
    %p78 = por %p76, %p77
    %p80 = scmp.ne.s32.totalorder %s63, %s79
    %p81 = scmp.eq.s32.totalorder %s29, 0
    %p82 = por %p80, %p81
    %s83 = ssub.s32 %s23, %s30
    %p84 = scmp.eq.s32.totalorder %s83, 0
    %s86 = sadd.s32 %s85, 1
    %s87 = scalar_select %p84, %s85, %s86
    %p90 = pneg %p84
    %p91 = scmp.eq.s32.totalorder %s23, 1
    %p92 = por %p90, %p91
    %p93 = scmp.ne.s32.totalorder %s85, %s88
    %p94 = scmp.eq.s32.totalorder %s23, 0
    %p95 = por %p93, %p94
    %p96 = scmp.ne.s32.totalorder %s85, %s88
    %p97 = scmp.eq.s32.totalorder %s28, 1
    %p98 = por %p96, %p97
    %p99 = scmp.ne.s32.totalorder %s88, %s89
    %p100 = scmp.eq.s32.totalorder %s28, 0
    %p101 = por %p99, %p100
    %p102 = scmp.ne.s32.totalorder %s88, %s89
    %p103 = scmp.eq.s32.totalorder %s29, 1
    %p104 = por %p102, %p103
    %p106 = scmp.ne.s32.totalorder %s89, %s105
    %p107 = scmp.eq.s32.totalorder %s29, 0
    %p108 = por %p106, %p107
    %s110 = sadd.s32 %s109, 1
    %p113 = scmp.eq.s32.totalorder %s23, 1
    %p114 = scmp.ne.s32.totalorder %s109, %s111
    %p115 = scmp.eq.s32.totalorder %s23, 0
    %p116 = por %p114, %p115
    %p117 = scmp.ne.s32.totalorder %s109, %s111
    %p118 = scmp.eq.s32.totalorder %s28, 1
    %p119 = por %p117, %p118
    %p120 = scmp.ne.s32.totalorder %s111, %s112
    %p121 = scmp.eq.s32.totalorder %s28, 0
    %p122 = por %p120, %p121
    %p123 = scmp.ne.s32.totalorder %s111, %s112
    %p124 = scmp.eq.s32.totalorder %s29, 1
    %p125 = por %p123, %p124
    %p127 = scmp.ne.s32.totalorder %s112, %s126
    %p128 = scmp.eq.s32.totalorder %s29, 0
    %p129 = por %p127, %p128
    %s131 = sadd.s32 %s130, 1
    %p134 = scmp.eq.s32.totalorder %s23, 1
    %p135 = scmp.ne.s32.totalorder %s130, %s132
    %p136 = scmp.eq.s32.totalorder %s23, 0
    %p137 = por %p135, %p136
    %p138 = scmp.ne.s32.totalorder %s130, %s132
    %p139 = scmp.eq.s32.totalorder %s28, 1
    %p140 = por %p138, %p139
    %p141 = scmp.ne.s32.totalorder %s132, %s133
    %p142 = scmp.eq.s32.totalorder %s28, 0
    %p143 = por %p141, %p142
    %p144 = scmp.ne.s32.totalorder %s132, %s133
    %p145 = scmp.eq.s32.totalorder %s29, 1
    %p146 = por %p144, %p145
    %p148 = scmp.ne.s32.totalorder %s133, %s147
    %p149 = scmp.eq.s32.totalorder %s29, 0
    %p150 = por %p148, %p149
    %s152 = sadd.s32 %s151, 1
    %p155 = scmp.eq.s32.totalorder %s23, 1
    %p156 = scmp.ne.s32.totalorder %s151, %s153
    %p157 = scmp.eq.s32.totalorder %s23, 0
    %p158 = por %p156, %p157
    %p159 = scmp.ne.s32.totalorder %s151, %s153
    %p160 = scmp.eq.s32.totalorder %s28, 1
    %p161 = por %p159, %p160
    %p162 = scmp.ne.s32.totalorder %s153, %s154
    %p163 = scmp.eq.s32.totalorder %s28, 0
    %p164 = por %p162, %p163
    %p165 = scmp.ne.s32.totalorder %s153, %s154
    %p166 = scmp.eq.s32.totalorder %s29, 1
    %p167 = por %p165, %p166
    %p169 = scmp.ne.s32.totalorder %s154, %s168
    %p170 = scmp.eq.s32.totalorder %s29, 0
    %p171 = por %p169, %p170
    %s173 = sadd.s32 %s172, 1
    %p176 = scmp.eq.s32.totalorder %s23, 1
    %p177 = scmp.ne.s32.totalorder %s172, %s174
    %p178 = scmp.eq.s32.totalorder %s23, 0
    %p179 = por %p177, %p178
    %p180 = scmp.ne.s32.totalorder %s172, %s174
    %p181 = scmp.eq.s32.totalorder %s28, 1
    %p182 = por %p180, %p181
    %p183 = scmp.ne.s32.totalorder %s174, %s175
    %p184 = scmp.eq.s32.totalorder %s28, 0
    %p185 = por %p183, %p184
    %p186 = scmp.ne.s32.totalorder %s174, %s175
    %p187 = scmp.eq.s32.totalorder %s29, 1
    %p188 = por %p186, %p187
    %p190 = scmp.ne.s32.totalorder %s175, %s189
    %p191 = scmp.eq.s32.totalorder %s29, 0
    %p192 = por %p190, %p191
    %s194 = sadd.s32 %s193, 1
    %p197 = scmp.eq.s32.totalorder %s23, 1
    %p198 = scmp.ne.s32.totalorder %s193, %s195
    %p199 = scmp.eq.s32.totalorder %s23, 0
    %p200 = por %p198, %p199
    %p201 = scmp.ne.s32.totalorder %s193, %s195
    %p202 = scmp.eq.s32.totalorder %s28, 1
    %p203 = por %p201, %p202
    %p204 = scmp.ne.s32.totalorder %s195, %s196
    %p205 = scmp.eq.s32.totalorder %s28, 0
    %p206 = por %p204, %p205
    %p207 = scmp.ne.s32.totalorder %s195, %s196
    %p208 = scmp.eq.s32.totalorder %s29, 1
    %p209 = por %p207, %p208
    %p211 = scmp.ne.s32.totalorder %s196, %s210
    %p212 = scmp.eq.s32.totalorder %s29, 0
    %p213 = por %p211, %p212
    %s215 = sadd.s32 %s214, 1
    %p218 = scmp.eq.s32.totalorder %s23, 1
    %p219 = scmp.ne.s32.totalorder %s214, %s216
    %p220 = scmp.eq.s32.totalorder %s23, 0
    %p221 = por %p219, %p220
    %p222 = scmp.ne.s32.totalorder %s214, %s216
    %p223 = scmp.eq.s32.totalorder %s28, 1
    %p224 = por %p222, %p223
    %p225 = scmp.ne.s32.totalorder %s216, %s217
    %p226 = scmp.eq.s32.totalorder %s28, 0
    %p227 = por %p225, %p226
    %p228 = scmp.ne.s32.totalorder %s216, %s217
    %p229 = scmp.eq.s32.totalorder %s29, 1
    %p230 = por %p228, %p229
    %p232 = scmp.ne.s32.totalorder %s217, %s231
    %p233 = scmp.eq.s32.totalorder %s29, 0
    %p234 = por %p232, %p233
    %s236 = sadd.s32 %s235, 1
    %p239 = scmp.eq.s32.totalorder %s23, 1
    %p240 = scmp.ne.s32.totalorder %s235, %s237
    %p241 = scmp.eq.s32.totalorder %s23, 0
    %p242 = por %p240, %p241
    %p243 = scmp.ne.s32.totalorder %s235, %s237
    %p244 = scmp.eq.s32.totalorder %s28, 1
    %p245 = por %p243, %p244
    %p246 = scmp.ne.s32.totalorder %s237, %s238
    %p247 = scmp.eq.s32.totalorder %s28, 0
    %p248 = por %p246, %p247
    %p249 = scmp.ne.s32.totalorder %s237, %s238
    %p250 = scmp.eq.s32.totalorder %s29, 1
    %p251 = por %p249, %p250
    %p253 = scmp.ne.s32.totalorder %s238, %s252
    %p254 = scmp.eq.s32.totalorder %s29, 0
    %p255 = por %p253, %p254
    %s257 = sadd.s32 %s256, 1
    %p260 = scmp.eq.s32.totalorder %s23, 1
    %p261 = scmp.ne.s32.totalorder %s256, %s258
    %p262 = scmp.eq.s32.totalorder %s23, 0
    %p263 = por %p261, %p262
    %p264 = scmp.ne.s32.totalorder %s256, %s258
    %p265 = scmp.eq.s32.totalorder %s28, 1
    %p266 = por %p264, %p265
    %p267 = scmp.ne.s32.totalorder %s258, %s259
    %p268 = scmp.eq.s32.totalorder %s28, 0
    %p269 = por %p267, %p268
    %p270 = scmp.ne.s32.totalorder %s258, %s259
    %p271 = scmp.eq.s32.totalorder %s29, 1
    %p272 = por %p270, %p271
    %p274 = scmp.ne.s32.totalorder %s259, %s273
    %p275 = scmp.eq.s32.totalorder %s29, 0
    %p276 = por %p274, %p275
    %s278 = sadd.s32 %s277, 1
    %p281 = scmp.eq.s32.totalorder %s23, 1
    %p282 = scmp.ne.s32.totalorder %s277, %s279
    %p283 = scmp.eq.s32.totalorder %s23, 0
    %p284 = por %p282, %p283
    %p285 = scmp.ne.s32.totalorder %s277, %s279
    %p286 = scmp.eq.s32.totalorder %s28, 1
    %p287 = por %p285, %p286
    %p288 = scmp.ne.s32.totalorder %s279, %s280
    %p289 = scmp.eq.s32.totalorder %s28, 0
    %p290 = por %p288, %p289
    %p291 = scmp.ne.s32.totalorder %s279, %s280
    %p292 = scmp.eq.s32.totalorder %s29, 1
    %p293 = por %p291, %p292
    %p295 = scmp.ne.s32.totalorder %s280, %s294
    %p296 = scmp.eq.s32.totalorder %s29, 0
    %p297 = por %p295, %p296
    %s299 = sadd.s32 %s298, 1
    %p302 = scmp.eq.s32.totalorder %s23, 1
    %p303 = scmp.ne.s32.totalorder %s298, %s300
    %p304 = scmp.eq.s32.totalorder %s23, 0
    %p305 = por %p303, %p304
    %p306 = scmp.ne.s32.totalorder %s298, %s300
    %p307 = scmp.eq.s32.totalorder %s28, 1
    %p308 = por %p306, %p307
    %p309 = scmp.ne.s32.totalorder %s300, %s301
    %p310 = scmp.eq.s32.totalorder %s28, 0
    %p311 = por %p309, %p310
    %p312 = scmp.ne.s32.totalorder %s300, %s301
    %p313 = scmp.eq.s32.totalorder %s29, 1
    %p314 = por %p312, %p313
    %p316 = scmp.ne.s32.totalorder %s301, %s315
    %p317 = scmp.eq.s32.totalorder %s29, 0
    %p318 = por %p316, %p317
    %s319 = ssub.s32 %s23, %s30
    %p320 = scmp.eq.s32.totalorder %s319, 0
    %s322 = sadd.s32 %s321, 1
    %s323 = scalar_select %p320, %s321, %s322
    %p326 = pneg %p320
    %p327 = scmp.eq.s32.totalorder %s23, 1
    %p328 = por %p326, %p327
    %p329 = scmp.ne.s32.totalorder %s321, %s324
    %p330 = scmp.eq.s32.totalorder %s23, 0
    %p331 = por %p329, %p330
    %p332 = scmp.ne.s32.totalorder %s321, %s324
    %p333 = scmp.eq.s32.totalorder %s28, 1
    %p334 = por %p332, %p333
    %p335 = scmp.ne.s32.totalorder %s324, %s325
    %p336 = scmp.eq.s32.totalorder %s28, 0
    %p337 = por %p335, %p336
    %p338 = scmp.ne.s32.totalorder %s324, %s325
    %p339 = scmp.eq.s32.totalorder %s29, 1
    %p340 = por %p338, %p339
    %p342 = scmp.ne.s32.totalorder %s325, %s341
    %p343 = scmp.eq.s32.totalorder %s29, 0
    %p344 = por %p342, %p343
    %s345 = ssub.s32 %s23, %s30
    %p346 = scmp.eq.s32.totalorder %s345, 0
    %s348 = sadd.s32 %s347, 1
    %s349 = scalar_select %p346, %s347, %s348
    %p352 = pneg %p346
    %p353 = scmp.eq.s32.totalorder %s23, 1
    %p354 = por %p352, %p353
    %p355 = scmp.ne.s32.totalorder %s347, %s350
    %p356 = scmp.eq.s32.totalorder %s23, 0
    %p357 = por %p355, %p356
    %p358 = scmp.ne.s32.totalorder %s347, %s350
    %p359 = scmp.eq.s32.totalorder %s28, 1
    %p360 = por %p358, %p359
    %p361 = scmp.ne.s32.totalorder %s350, %s351
    %p362 = scmp.eq.s32.totalorder %s28, 0
    %p363 = por %p361, %p362
    %p364 = scmp.ne.s32.totalorder %s350, %s351
    %p365 = scmp.eq.s32.totalorder %s29, 1
    %p366 = por %p364, %p365
    %p368 = scmp.ne.s32.totalorder %s351, %s367
    %p369 = scmp.eq.s32.totalorder %s29, 0
    %p370 = por %p368, %p369
    %s371 = ssub.s32 %s23, %s30
    %p372 = scmp.eq.s32.totalorder %s371, 0
    %s374 = sadd.s32 %s373, 1
    %s375 = scalar_select %p372, %s373, %s374
    %p378 = pneg %p372
    %p379 = scmp.eq.s32.totalorder %s23, 1
    %p380 = por %p378, %p379
    %p381 = scmp.ne.s32.totalorder %s373, %s376
    %p382 = scmp.eq.s32.totalorder %s23, 0
    %p383 = por %p381, %p382
    %p384 = scmp.ne.s32.totalorder %s373, %s376
    %p385 = scmp.eq.s32.totalorder %s28, 1
    %p386 = por %p384, %p385
    %p387 = scmp.ne.s32.totalorder %s376, %s377
    %p388 = scmp.eq.s32.totalorder %s28, 0
    %p389 = por %p387, %p388
    %p390 = scmp.ne.s32.totalorder %s376, %s377
    %p391 = scmp.eq.s32.totalorder %s29, 1
    %p392 = por %p390, %p391
    %p394 = scmp.ne.s32.totalorder %s377, %s393
    %p395 = scmp.eq.s32.totalorder %s29, 0
    %p396 = por %p394, %p395
    %s397 = ssub.s32 %s23, %s30
    %p398 = scmp.eq.s32.totalorder %s397, 0
    %s400 = sadd.s32 %s399, 1
    %s401 = scalar_select %p398, %s399, %s400
    %p404 = pneg %p398
    %p405 = scmp.eq.s32.totalorder %s23, 1
    %p406 = por %p404, %p405
    %p407 = scmp.ne.s32.totalorder %s399, %s402
    %p408 = scmp.eq.s32.totalorder %s23, 0
    %p409 = por %p407, %p408
    %p410 = scmp.ne.s32.totalorder %s399, %s402
    %p411 = scmp.eq.s32.totalorder %s28, 1
    %p412 = por %p410, %p411
    %p413 = scmp.ne.s32.totalorder %s402, %s403
    %p414 = scmp.eq.s32.totalorder %s28, 0
    %p415 = por %p413, %p414
    %p416 = scmp.ne.s32.totalorder %s402, %s403
    %p417 = scmp.eq.s32.totalorder %s29, 1
    %p418 = por %p416, %p417
    %p420 = scmp.ne.s32.totalorder %s403, %s419
    %p421 = scmp.eq.s32.totalorder %s29, 0
    %p422 = por %p420, %p421
    %p423 = scmp.le.s32.totalorder 1, %s23
    %p424 = scmp.lt.s32.totalorder %s23, 3
    %p425 = pnand %p423, %p424
    %p426 = pneg %p425
    // Predicated region
    $region9: #{forward.2} parent=5 // pred_check
      _
    $region10: #{forward.2} parent=5 // pred_check_branch
      %428 = sbr.rel (%p425) target = $region12
    $region11: #{forward.2} parent=5 // pred_region
      %s429 = ssub.s32 %s23, 1
      // Predicated region
      $region13: #{forward.2} parent=11 // pred_check
        %p430 = pneg %p122
      $region14: #{forward.2} parent=11 // pred_check_branch
        %432 = sbr.rel (%p430) target = $region16
      $region15: #{forward.2} parent=11 // pred_region
        _
      $region16: #{forward.2} parent=11 // pred_fallthru
        _
      // Predicated region
      $region17: #{forward.2} parent=11 // pred_check
        %p433 = pneg %p143
      $region18: #{forward.2} parent=11 // pred_check_branch
        %435 = sbr.rel (%p433) target = $region20
      $region19: #{forward.2} parent=11 // pred_region
        _
      $region20: #{forward.2} parent=11 // pred_fallthru
        _
      // Predicated region
      $region21: #{forward.2} parent=11 // pred_check
        %p436 = pneg %p164
      $region22: #{forward.2} parent=11 // pred_check_branch
        %438 = sbr.rel (%p436) target = $region24
      $region23: #{forward.2} parent=11 // pred_region
        _
      $region24: #{forward.2} parent=11 // pred_fallthru
        _
      // Predicated region
      $region25: #{forward.2} parent=11 // pred_check
        %p439 = pneg %p185
      $region26: #{forward.2} parent=11 // pred_check_branch
        %441 = sbr.rel (%p439) target = $region28
      $region27: #{forward.2} parent=11 // pred_region
        _
      $region28: #{forward.2} parent=11 // pred_fallthru
        _
      // Predicated region
      $region29: #{forward.2} parent=11 // pred_check
        %p442 = pneg %p206
      $region30: #{forward.2} parent=11 // pred_check_branch
        %444 = sbr.rel (%p442) target = $region32
      $region31: #{forward.2} parent=11 // pred_region
        _
      $region32: #{forward.2} parent=11 // pred_fallthru
        _
      // Predicated region
      $region33: #{forward.2} parent=11 // pred_check
        %p445 = pneg %p227
      $region34: #{forward.2} parent=11 // pred_check_branch
        %447 = sbr.rel (%p445) target = $region36
      $region35: #{forward.2} parent=11 // pred_region
        _
      $region36: #{forward.2} parent=11 // pred_fallthru
        _
      // Predicated region
      $region37: #{forward.2} parent=11 // pred_check
        %p448 = pneg %p248
      $region38: #{forward.2} parent=11 // pred_check_branch
        %450 = sbr.rel (%p448) target = $region40
      $region39: #{forward.2} parent=11 // pred_region
        _
      $region40: #{forward.2} parent=11 // pred_fallthru
        _
      // Predicated region
      $region41: #{forward.2} parent=11 // pred_check
        %p451 = pneg %p269
      $region42: #{forward.2} parent=11 // pred_check_branch
        %453 = sbr.rel (%p451) target = $region44
      $region43: #{forward.2} parent=11 // pred_region
        _
      $region44: #{forward.2} parent=11 // pred_fallthru
        _
      // Predicated region
      $region45: #{forward.2} parent=11 // pred_check
        %p454 = pneg %p290
      $region46: #{forward.2} parent=11 // pred_check_branch
        %456 = sbr.rel (%p454) target = $region48
      $region47: #{forward.2} parent=11 // pred_region
        _
      $region48: #{forward.2} parent=11 // pred_fallthru
        _
      // Predicated region
      $region49: #{forward.2} parent=11 // pred_check
        %p457 = pneg %p311
      $region50: #{forward.2} parent=11 // pred_check_branch
        %459 = sbr.rel (%p457) target = $region52
      $region51: #{forward.2} parent=11 // pred_region
        _
      $region52: #{forward.2} parent=11 // pred_fallthru
        _
    $region12: #{forward.2} parent=5 // pred_fallthru
      _
    %p460 = scmp.lt.s32.totalorder %s23, 2
    // Predicated region
    $region53: #{forward.2} parent=5 // pred_check
      %p461 = pneg %p460
    $region54: #{forward.2} parent=5 // pred_check_branch
      %463 = sbr.rel (%p461) target = $region56
    $region55: #{forward.2} parent=5 // pred_region
      // Predicated region
      $region57: #{forward.2} parent=55 // pred_check
        %p464 = pneg %p43
      $region58: #{forward.2} parent=55 // pred_check_branch
        %466 = sbr.rel (%p464) target = $region60
      $region59: #{forward.2} parent=55 // pred_region
        %p467 = scmp.lt.s32.totalorder %s23, 1
        %s468 = scalar_select %p467, %s23, 1
        %s469 = smul.addr %s468, 32
        %s470 = smul.addr %s469, 4
        %s471 = scalar_lea.vmem %s0, %s470
      $region60: #{forward.2} parent=55 // pred_fallthru
        _
      // Predicated region
      $region61: #{forward.2} parent=55 // pred_check
        %p472 = pneg %p69
      $region62: #{forward.2} parent=55 // pred_check_branch
        %474 = sbr.rel (%p472) target = $region64
      $region63: #{forward.2} parent=55 // pred_region
        %p475 = scmp.lt.s32.totalorder %s23, 1
        %s476 = scalar_select %p475, %s23, 1
        %s477 = smul.addr %s476, 32
        %s478 = smul.addr %s477, 4
        %s479 = scalar_lea.vmem %s1, %s478
      $region64: #{forward.2} parent=55 // pred_fallthru
        _
      // Predicated region
      $region65: #{forward.2} parent=55 // pred_check
        %p480 = pneg %p95
      $region66: #{forward.2} parent=55 // pred_check_branch
        %482 = sbr.rel (%p480) target = $region68
      $region67: #{forward.2} parent=55 // pred_region
        %p483 = scmp.lt.s32.totalorder %s23, 1
        %s484 = scalar_select %p483, %s23, 1
        %s485 = smul.addr %s484, 2
        %s486 = scalar_lea.vmem %s2, %s485
      $region68: #{forward.2} parent=55 // pred_fallthru
        _
    $region56: #{forward.2} parent=5 // pred_fallthru
      _
    %p487 = scmp.le.s32.totalorder 1, %s23
    %p488 = scmp.lt.s32.totalorder %s23, 3
    %p489 = pnand %p487, %p488
    %p490 = pneg %p489
    // Predicated region
    $region69: #{forward.2} parent=5 // pred_check
      _
    $region70: #{forward.2} parent=5 // pred_check_branch
      %492 = sbr.rel (%p489) target = $region72
    $region71: #{forward.2} parent=5 // pred_region
      %s493 = ssub.s32 %s23, 1
      %p494 = scmp.lt.s32.totalorder %s28, 1
      %s495 = scalar_select %p494, %s28, 1
      %s496 = smul.addr %s495, 32
      %s497 = smul.addr %s496, 4
      %s498 = scalar_lea.vmem %s0, %s497
      %p499 = pneg %p49
      %p500 = pneg %p46
      %p501 = scmp.lt.s32.totalorder %s28, 1
      %s502 = scalar_select %p501, %s28, 1
      %s503 = smul.addr %s502, 32
      %s504 = smul.addr %s503, 4
      %s505 = scalar_lea.vmem %s1, %s504
      %p506 = pneg %p75
      %p507 = pneg %p72
      %p508 = scmp.lt.s32.totalorder %s28, 1
      %s509 = scalar_select %p508, %s28, 1
      %s510 = smul.addr %s509, 2
      %s511 = scalar_lea.vmem %s2, %s510
      %p512 = pneg %p101
      %p513 = pneg %p98
      %p514 = pneg %p122
      %p515 = pneg %p119
      %p516 = pneg %p143
      %p517 = pneg %p140
      %p518 = pneg %p164
      %p519 = pneg %p161
      %p520 = pneg %p185
      %p521 = pneg %p182
      %p522 = pneg %p206
      %p523 = pneg %p203
      %p524 = pneg %p227
      %p525 = pneg %p224
      %p526 = pneg %p248
      %p527 = pneg %p245
      %p528 = pneg %p269
      %p529 = pneg %p266
      %p530 = pneg %p290
      %p531 = pneg %p287
      %p532 = pneg %p311
      %p533 = pneg %p308
      %p534 = pneg %p337
      %p535 = pneg %p334
      %p536 = scmp.lt.s32.totalorder %s28, 1
      %s537 = scalar_select %p536, %s28, 1
      %s538 = scalar_lea.vmem %s13, %s537
      %p539 = pneg %p363
      %p540 = pneg %p360
      %p541 = scmp.lt.s32.totalorder %s28, 1
      %s542 = scalar_select %p541, %s28, 1
      %s543 = scalar_lea.vmem %s14, %s542
      %p544 = pneg %p389
      %p545 = pneg %p386
      %p546 = scmp.lt.s32.totalorder %s28, 1
      %s547 = scalar_select %p546, %s28, 1
      %s548 = scalar_lea.vmem %s15, %s547
      %p549 = pneg %p415
      %p550 = pneg %p412
      %p551 = scmp.lt.s32.totalorder %s28, 1
      %s552 = scalar_select %p551, %s28, 1
      %s553 = scalar_lea.vmem %s16, %s552
      %p554 = scmp.lt.s32.totalorder %s28, 1
      %s555 = scalar_select %p554, %s28, 1
      %s556 = smul.addr %s555, 32
      %s557 = smul.addr %s556, 4
      %s558 = scalar_lea.vmem %s0, %s557
      %p559 = scmp.lt.s32.totalorder %s28, 1
      %s560 = scalar_select %p559, %s28, 1
      %s561 = smul.addr %s560, 32
      %s562 = smul.addr %s561, 4
      %s563 = scalar_lea.vmem %s1, %s562
      %p564 = scmp.lt.s32.totalorder %s28, 1
      %s565 = scalar_select %p564, %s28, 1
      %s566 = smul.addr %s565, 2
      %s567 = scalar_lea.vmem %s2, %s566
      %p568 = scmp.lt.s32.totalorder %s28, 1
      %s569 = scalar_select %p568, %s28, 1
      %s570 = scalar_lea.vmem %s13, %s569
      %p571 = scmp.lt.s32.totalorder %s28, 1
      %s572 = scalar_select %p571, %s28, 1
      %s573 = scalar_lea.vmem %s14, %s572
      %p574 = scmp.lt.s32.totalorder %s28, 1
      %s575 = scalar_select %p574, %s28, 1
      %s576 = scalar_lea.vmem %s15, %s575
      %p577 = scmp.lt.s32.totalorder %s28, 1
      %s578 = scalar_select %p577, %s28, 1
      %s579 = scalar_lea.vmem %s16, %s578
      %v581 = vld [vmem:[%s3] sm:$0x3]
      %v582 = vld [vmem:[%s4] sm:$0x1]
      %v583 = vld [vmem:[%s5] sm:$0xf]
      %v584 = vld [vmem:[%s5 + $0x4] sm:$0xf]
      %v585 = vld [vmem:[%s5 + $0x8] sm:$0xf]
      %v586 = vld [vmem:[%s5 + $0xc] sm:$0xf]
      %v587 = vld [vmem:[%s6] sm:$0x1]
      %v588 = vld [vmem:[%s7] sm:$0xf]
      %v589 = vld [vmem:[%s7 + $0x4] sm:$0xf]
      %v590 = vld [vmem:[%s7 + $0x8] sm:$0xf]
      %v591 = vld [vmem:[%s7 + $0xc] sm:$0xf]
      %v592 = vld [vmem:[%s8] sm:$0x1]
      %v593 = vld [vmem:[%s9] sm:$0xf]
      %v594 = vld [vmem:[%s9 + $0x4] sm:$0xf]
      %v595 = vld [vmem:[%s9 + $0x8] sm:$0xf]
      %v596 = vld [vmem:[%s9 + $0xc] sm:$0xf]
      %v597 = vld [vmem:[%s10] sm:$0x1]
      %v598 = vld [vmem:[%s11] sm:$0xf]
      %v599 = vld [vmem:[%s11 + $0x4] sm:$0xf]
      %v600 = vld [vmem:[%s11 + $0x8] sm:$0xf]
      %v601 = vld [vmem:[%s11 + $0xc] sm:$0xf]
      %v602 = vld [vmem:[%s12] sm:$0x1]
      %v603 = vld [vmem:[%s567] sm:$0x3]
      %v604 = vlaneseq
      %v605 = vshrl.u32 %v604, 7
      %v606 = vlaneseq
      %v607 = vshrl.u32 %v606, 7
      %v608 = vsub.s32 0, %v607
      %v609 = vrot.slane %v603, %v608
      %v610 = vlaneseq
      %v611 = vshrl.u32 %v610, 7
      %v612 = vsub.s32 1, %v611
      %v613 = vrot.slane %v603, %v612
      %vm614 = vcmp.eq.s32.totalorder %v609, %v605
      %vm615 = vcmp.eq.s32.totalorder %v613, %v605
      %v616 = vsel %vm614, 1.0, 0.0
      %v617 = vsel %vm615, 1.0, 0.0
      %vm618 = vcmask 1043456
      %v619 = vsel %vm618, %v616, 0.0
      %v620 = vsel %vm618, %v617, 0.0
      %v621 = vadd.f32 %v619, %v620
      %622 = vadd.xlane.f32.xlu0 %v621
      %v623 = vpop.xlane.xlu0 %622
      %v624 = vpack.c.bf16 %v616, %v616
      %v625 = vpack.c.bf16 %v617, %v617
      %v626 = vmax.f32 %v623, 1.0
      %v627 = vrcp.pop %v626
      %v628 = vmul.f32 1.0, %v627
      %v629 = vld [vmem:[%s558] sm:$0xf]
      %v630 = vld [vmem:[%s558 + $0x4] sm:$0xf]
      %v631 = vld [vmem:[%s558 + $0x8] sm:$0xf]
      %v632 = vld [vmem:[%s558 + $0xc] sm:$0xf]
      %v633 = vld [vmem:[%s558 + $0x10] sm:$0xf]
      %v634 = vld [vmem:[%s558 + $0x14] sm:$0xf]
      %v635 = vld [vmem:[%s558 + $0x18] sm:$0xf]
      %v636 = vld [vmem:[%s558 + $0x1c] sm:$0xf]
      %v637 = vld [vmem:[%s558 + $0x20] sm:$0xf]
      %v638 = vld [vmem:[%s558 + $0x24] sm:$0xf]
      %v639 = vld [vmem:[%s558 + $0x28] sm:$0xf]
      %v640 = vld [vmem:[%s558 + $0x2c] sm:$0xf]
      %v641 = vld [vmem:[%s558 + $0x30] sm:$0xf]
      %v642 = vld [vmem:[%s558 + $0x34] sm:$0xf]
      %v643 = vld [vmem:[%s558 + $0x38] sm:$0xf]
      %v644 = vld [vmem:[%s558 + $0x3c] sm:$0xf]
      %v645 = vld [vmem:[%s558 + $0x40] sm:$0xf]
      %v646 = vld [vmem:[%s558 + $0x44] sm:$0xf]
      %v647 = vld [vmem:[%s558 + $0x48] sm:$0xf]
      %v648 = vld [vmem:[%s558 + $0x4c] sm:$0xf]
      %v649 = vld [vmem:[%s558 + $0x50] sm:$0xf]
      %v650 = vld [vmem:[%s558 + $0x54] sm:$0xf]
      %v651 = vld [vmem:[%s558 + $0x58] sm:$0xf]
      %v652 = vld [vmem:[%s558 + $0x5c] sm:$0xf]
      %v653 = vld [vmem:[%s558 + $0x60] sm:$0xf]
      %v654 = vld [vmem:[%s558 + $0x64] sm:$0xf]
      %v655 = vld [vmem:[%s558 + $0x68] sm:$0xf]
      %v656 = vld [vmem:[%s558 + $0x6c] sm:$0xf]
      %v657 = vld [vmem:[%s558 + $0x70] sm:$0xf]
      %v658 = vld [vmem:[%s558 + $0x74] sm:$0xf]
      %v659 = vld [vmem:[%s558 + $0x78] sm:$0xf]
      %v660 = vld [vmem:[%s558 + $0x7c] sm:$0xf]
      %v662 = vlaneseq
      %v663 = vshrl.u32 %v662, 7
      %v664 = vsub.s32 0, %v663
      %v665 = vrot.slane %v582, %v664
      %v699 = vunpack.c.l.b16 %v629
      %v700 = vunpack.c.l.b16 %v630
      %v701 = vunpack.c.l.b16 %v631
      %v702 = vunpack.c.l.b16 %v632
      %v703 = vunpack.c.l.b16 %v633
      %v704 = vunpack.c.l.b16 %v634
      %v705 = vunpack.c.l.b16 %v635
      %v706 = vunpack.c.l.b16 %v636
      %v707 = vunpack.c.l.b16 %v637
      %v708 = vunpack.c.l.b16 %v638
      %v709 = vunpack.c.l.b16 %v639
      %v710 = vunpack.c.l.b16 %v640
      %v711 = vunpack.c.l.b16 %v641
      %v712 = vunpack.c.l.b16 %v642
      %v713 = vunpack.c.l.b16 %v643
      %v714 = vunpack.c.l.b16 %v644
      %v715 = vunpack.c.l.b16 %v645
      %v716 = vunpack.c.l.b16 %v646
      %v717 = vunpack.c.l.b16 %v647
      %v718 = vunpack.c.l.b16 %v648
      %v719 = vunpack.c.l.b16 %v649
      %v720 = vunpack.c.l.b16 %v650
      %v721 = vunpack.c.l.b16 %v651
      %v722 = vunpack.c.l.b16 %v652
      %v723 = vunpack.c.l.b16 %v653
      %v724 = vunpack.c.l.b16 %v654
      %v725 = vunpack.c.l.b16 %v655
      %v726 = vunpack.c.l.b16 %v656
      %v727 = vunpack.c.l.b16 %v657
      %v728 = vunpack.c.l.b16 %v658
      %v729 = vunpack.c.l.b16 %v659
      %v730 = vunpack.c.l.b16 %v660
      %v731 = vpack.c.b16 %v700, %v699
      %v732 = vpack.c.b16 %v702, %v701
      %v733 = vpack.c.b16 %v704, %v703
      %v734 = vpack.c.b16 %v706, %v705
      %v735 = vpack.c.b16 %v708, %v707
      %v736 = vpack.c.b16 %v710, %v709
      %v737 = vpack.c.b16 %v712, %v711
      %v738 = vpack.c.b16 %v714, %v713
      %v739 = vpack.c.b16 %v716, %v715
      %v740 = vpack.c.b16 %v718, %v717
      %v741 = vpack.c.b16 %v720, %v719
      %v742 = vpack.c.b16 %v722, %v721
      %v743 = vpack.c.b16 %v724, %v723
      %v744 = vpack.c.b16 %v726, %v725
      %v745 = vpack.c.b16 %v728, %v727
      %v746 = vpack.c.b16 %v730, %v729
      %vm747 = vcmask 31744
      %v749 = vsel %vm747, %v731, 0
      %v752 = vsel %vm747, %v732, 0
      %v755 = vsel %vm747, %v733, 0
      %v758 = vsel %vm747, %v734, 0
      %v761 = vsel %vm747, %v735, 0
      %v764 = vsel %vm747, %v736, 0
      %v767 = vsel %vm747, %v737, 0
      %v770 = vsel %vm747, %v738, 0
      %v773 = vsel %vm747, %v739, 0
      %v776 = vsel %vm747, %v740, 0
      %v779 = vsel %vm747, %v741, 0
      %v782 = vsel %vm747, %v742, 0
      %v785 = vsel %vm747, %v743, 0
      %v788 = vsel %vm747, %v744, 0
      %v791 = vsel %vm747, %v745, 0
      %v794 = vsel %vm747, %v746, 0
      %vm796 = vcmask 1041408
      %v798 = vsel %vm796, %v581, 0
      %800 = vmatprep.subr.bf16.mxu0 0
      %801 = vmatpush1.bf16.msra.mxu0 %v798
      %802 = vmatprep.subr.bf16.mxu0 0
      %803 = vmatpush1.bf16.msra.mxu0 0
      %804 = vmatprep.subr.bf16.mxu0 0
      %805 = vmatpush1.bf16.msra.mxu0 0
      %806 = vmatprep.subr.bf16.mxu0 0
      %807 = vmatpush1.bf16.msra.mxu0 0
      %808 = vmatprep.subr.bf16.mxu0 0
      %809 = vmatpush1.bf16.msra.mxu0 0
      %810 = vmatprep.subr.bf16.mxu0 0
      %811 = vmatpush1.bf16.msra.mxu0 0
      %812 = vmatprep.subr.bf16.mxu0 0
      %813 = vmatpush1.bf16.msra.mxu0 0
      %814 = vmatprep.subr.bf16.mxu0 0
      %815 = vmatpush1.bf16.msra.mxu0 0
      %816 = vmatprep.subr.bf16.mxu0 0
      %817 = vmatpush1.bf16.msra.mxu0 0
      %818 = vmatprep.subr.bf16.mxu0 0
      %819 = vmatpush1.bf16.msra.mxu0 0
      %820 = vmatprep.subr.bf16.mxu0 0
      %821 = vmatpush1.bf16.msra.mxu0 0
      %822 = vmatprep.subr.bf16.mxu0 0
      %823 = vmatpush1.bf16.msra.mxu0 0
      %824 = vmatprep.subr.bf16.mxu0 0
      %825 = vmatpush1.bf16.msra.mxu0 0
      %826 = vmatprep.subr.bf16.mxu0 0
      %827 = vmatpush1.bf16.msra.mxu0 0
      %828 = vmatprep.subr.bf16.mxu0 0
      %829 = vmatpush1.bf16.msra.mxu0 0
      %830 = vmatprep.subr.bf16.mxu0 0
      %831 = vmatpush1.bf16.msra.mxu0 0
      %832 = vmatprep.mubr.bf16.mxu0 0
      %833 = vmatmul.mubr.bf16.gmra.mrb[0].mxu0 %v749
      %v834 = vpop.f32.mrb[0].mxu0
      %v835 = vadd.f32 %v665, %v834
      %v836 = vpop.f32.mrb[0].mxu0
      %v837 = vpop.f32.mrb[0].mxu0
      %v838 = vadd.f32 %v665, %v837
      %v839 = vpop.f32.mrb[0].mxu0
      %840 = vmatprep.mubr.bf16.mxu0 0
      %841 = vmatmul.mubr.bf16.gmra.mrb[0].mxu0 %v752
      %v842 = vpop.f32.mrb[0].mxu0
      %v843 = vadd.f32 %v665, %v842
      %v844 = vpop.f32.mrb[0].mxu0
      %v845 = vpop.f32.mrb[0].mxu0
      %v846 = vadd.f32 %v665, %v845
      %v847 = vpop.f32.mrb[0].mxu0
      %848 = vmatprep.mubr.bf16.mxu0 0
      %849 = vmatmul.mubr.bf16.gmra.mrb[0].mxu0 %v755
      %v850 = vpop.f32.mrb[0].mxu0
      %v851 = vadd.f32 %v665, %v850
      %v852 = vpop.f32.mrb[0].mxu0
      %v853 = vpop.f32.mrb[0].mxu0
      %v854 = vadd.f32 %v665, %v853
      %v855 = vpop.f32.mrb[0].mxu0
      %856 = vmatprep.mubr.bf16.mxu0 0
      %857 = vmatmul.mubr.bf16.gmra.mrb[0].mxu0 %v758
      %v858 = vpop.f32.mrb[0].mxu0
      %v859 = vadd.f32 %v665, %v858
      %v860 = vpop.f32.mrb[0].mxu0
      %v861 = vpop.f32.mrb[0].mxu0
      %v862 = vadd.f32 %v665, %v861
      %v863 = vpop.f32.mrb[0].mxu0
      %864 = vmatprep.mubr.bf16.mxu0 0
      %865 = vmatmul.mubr.bf16.gmra.mrb[0].mxu0 %v761
      %v866 = vpop.f32.mrb[0].mxu0
      %v867 = vadd.f32 %v665, %v866
      %v868 = vpop.f32.mrb[0].mxu0
      %v869 = vpop.f32.mrb[0].mxu0
      %v870 = vadd.f32 %v665, %v869
      %v871 = vpop.f32.mrb[0].mxu0
      %872 = vmatprep.mubr.bf16.mxu0 0
      %873 = vmatmul.mubr.bf16.gmra.mrb[0].mxu0 %v764
      %v874 = vpop.f32.mrb[0].mxu0
      %v875 = vadd.f32 %v665, %v874
      %v876 = vpop.f32.mrb[0].mxu0
      %v877 = vpop.f32.mrb[0].mxu0
      %v878 = vadd.f32 %v665, %v877
      %v879 = vpop.f32.mrb[0].mxu0
      %880 = vmatprep.mubr.bf16.mxu0 0
      %881 = vmatmul.mubr.bf16.gmra.mrb[0].mxu0 %v767
      %v882 = vpop.f32.mrb[0].mxu0
      %v883 = vadd.f32 %v665, %v882
      %v884 = vpop.f32.mrb[0].mxu0
      %v885 = vpop.f32.mrb[0].mxu0
      %v886 = vadd.f32 %v665, %v885
      %v887 = vpop.f32.mrb[0].mxu0
      %888 = vmatprep.mubr.bf16.mxu0 0
      %889 = vmatmul.mubr.bf16.gmra.mrb[0].mxu0 %v770
      %v890 = vpop.f32.mrb[0].mxu0
      %v891 = vadd.f32 %v665, %v890
      %v892 = vpop.f32.mrb[0].mxu0
      %v893 = vpop.f32.mrb[0].mxu0
      %v894 = vadd.f32 %v665, %v893
      %v895 = vpop.f32.mrb[0].mxu0
      %896 = vmatprep.mubr.bf16.mxu0 0
      %897 = vmatmul.mubr.bf16.gmra.mrb[0].mxu0 %v773
      %v898 = vpop.f32.mrb[0].mxu0
      %v899 = vadd.f32 %v665, %v898
      %v900 = vpop.f32.mrb[0].mxu0
      %v901 = vpop.f32.mrb[0].mxu0
      %v902 = vadd.f32 %v665, %v901
      %v903 = vpop.f32.mrb[0].mxu0
      %904 = vmatprep.mubr.bf16.mxu0 0
      %905 = vmatmul.mubr.bf16.gmra.mrb[0].mxu0 %v776
      %v906 = vpop.f32.mrb[0].mxu0
      %v907 = vadd.f32 %v665, %v906
      %v908 = vpop.f32.mrb[0].mxu0
      %v909 = vpop.f32.mrb[0].mxu0
      %v910 = vadd.f32 %v665, %v909
      %v911 = vpop.f32.mrb[0].mxu0
      %912 = vmatprep.mubr.bf16.mxu0 0
      %913 = vmatmul.mubr.bf16.gmra.mrb[0].mxu0 %v779
      %v914 = vpop.f32.mrb[0].mxu0
      %v915 = vadd.f32 %v665, %v914
      %v916 = vpop.f32.mrb[0].mxu0
      %v917 = vpop.f32.mrb[0].mxu0
      %v918 = vadd.f32 %v665, %v917
      %v919 = vpop.f32.mrb[0].mxu0
      %920 = vmatprep.mubr.bf16.mxu0 0
      %921 = vmatmul.mubr.bf16.gmra.mrb[0].mxu0 %v782
      %v922 = vpop.f32.mrb[0].mxu0
      %v923 = vadd.f32 %v665, %v922
      %v924 = vpop.f32.mrb[0].mxu0
      %v925 = vpop.f32.mrb[0].mxu0
      %v926 = vadd.f32 %v665, %v925
      %v927 = vpop.f32.mrb[0].mxu0
      %928 = vmatprep.mubr.bf16.mxu0 0
      %929 = vmatmul.mubr.bf16.gmra.mrb[0].mxu0 %v785
      %v930 = vpop.f32.mrb[0].mxu0
      %v931 = vadd.f32 %v665, %v930
      %v932 = vpop.f32.mrb[0].mxu0
      %v933 = vpop.f32.mrb[0].mxu0
      %v934 = vadd.f32 %v665, %v933
      %v935 = vpop.f32.mrb[0].mxu0
      %936 = vmatprep.mubr.bf16.mxu0 0
      %937 = vmatmul.mubr.bf16.gmra.mrb[0].mxu0 %v788
      %v938 = vpop.f32.mrb[0].mxu0
      %v939 = vadd.f32 %v665, %v938
      %v940 = vpop.f32.mrb[0].mxu0
      %v941 = vpop.f32.mrb[0].mxu0
      %v942 = vadd.f32 %v665, %v941
      %v943 = vpop.f32.mrb[0].mxu0
      %944 = vmatprep.mubr.bf16.mxu0 0
      %945 = vmatmul.mubr.bf16.gmra.mrb[0].mxu0 %v791
      %v946 = vpop.f32.mrb[0].mxu0
      %v947 = vadd.f32 %v665, %v946
      %v948 = vpop.f32.mrb[0].mxu0
      %v949 = vpop.f32.mrb[0].mxu0
      %v950 = vadd.f32 %v665, %v949
      %v951 = vpop.f32.mrb[0].mxu0
      %952 = vmatprep.mubr.bf16.mxu0 0
      %953 = vmatmul.mubr.bf16.gmra.mrb[0].mxu0 %v794
      %v954 = vpop.f32.mrb[0].mxu0
      %v955 = vadd.f32 %v665, %v954
      %v956 = vpop.f32.mrb[0].mxu0
      %v957 = vpop.f32.mrb[0].mxu0
      %v958 = vadd.f32 %v665, %v957
      %v959 = vpop.f32.mrb[0].mxu0
      %960 = vdwg.mxu0
      %v961 = vmax.f32 %v835, 0.0
      %v962 = vmax.f32 %v838, 0.0
      %v963 = vmax.f32 %v843, 0.0
      %v964 = vmax.f32 %v846, 0.0
      %v965 = vmax.f32 %v851, 0.0
      %v966 = vmax.f32 %v854, 0.0
      %v967 = vmax.f32 %v859, 0.0
      %v968 = vmax.f32 %v862, 0.0
      %v969 = vmax.f32 %v867, 0.0
      %v970 = vmax.f32 %v870, 0.0
      %v971 = vmax.f32 %v875, 0.0
      %v972 = vmax.f32 %v878, 0.0
      %v973 = vmax.f32 %v883, 0.0
      %v974 = vmax.f32 %v886, 0.0
      %v975 = vmax.f32 %v891, 0.0
      %v976 = vmax.f32 %v894, 0.0
      %v977 = vmax.f32 %v899, 0.0
      %v978 = vmax.f32 %v902, 0.0
      %v979 = vmax.f32 %v907, 0.0
      %v980 = vmax.f32 %v910, 0.0
      %v981 = vmax.f32 %v915, 0.0
      %v982 = vmax.f32 %v918, 0.0
      %v983 = vmax.f32 %v923, 0.0
      %v984 = vmax.f32 %v926, 0.0
      %v985 = vmax.f32 %v931, 0.0
      %v986 = vmax.f32 %v934, 0.0
      %v987 = vmax.f32 %v939, 0.0
      %v988 = vmax.f32 %v942, 0.0
      %v989 = vmax.f32 %v947, 0.0
      %v990 = vmax.f32 %v950, 0.0
      %v991 = vmax.f32 %v955, 0.0
      %v992 = vmax.f32 %v958, 0.0
      %v993 = vpack.c.bf16 %v962, %v961
      %v994 = vpack.c.bf16 %v964, %v963
      %v995 = vpack.c.bf16 %v966, %v965
      %v996 = vpack.c.bf16 %v968, %v967
      %v997 = vpack.c.bf16 %v970, %v969
      %v998 = vpack.c.bf16 %v972, %v971
      %v999 = vpack.c.bf16 %v974, %v973
      %v1000 = vpack.c.bf16 %v976, %v975
      %v1001 = vpack.c.bf16 %v978, %v977
      %v1002 = vpack.c.bf16 %v980, %v979
      %v1003 = vpack.c.bf16 %v982, %v981
      %v1004 = vpack.c.bf16 %v984, %v983
      %v1005 = vpack.c.bf16 %v986, %v985
      %v1006 = vpack.c.bf16 %v988, %v987
      %v1007 = vpack.c.bf16 %v990, %v989
      %v1008 = vpack.c.bf16 %v992, %v991
      %vm1009 = vcmask 261120
      %v1010 = vsel %vm1009, %v961, 0.0
      %v1011 = vsel %vm1009, %v962, 0.0
      %v1012 = vadd.f32 %v1010, %v1011
      %v1013 = vsel %vm1009, %v963, 0.0
      %v1014 = vadd.f32 %v1012, %v1013
      %v1015 = vsel %vm1009, %v964, 0.0
      %v1016 = vadd.f32 %v1014, %v1015
      %v1017 = vsel %vm1009, %v965, 0.0
      %v1018 = vadd.f32 %v1016, %v1017
      %v1019 = vsel %vm1009, %v966, 0.0
      %v1020 = vadd.f32 %v1018, %v1019
      %v1021 = vsel %vm1009, %v967, 0.0
      %v1022 = vadd.f32 %v1020, %v1021
      %v1023 = vsel %vm1009, %v968, 0.0
      %v1024 = vadd.f32 %v1022, %v1023
      %v1025 = vsel %vm1009, %v969, 0.0
      %v1026 = vadd.f32 %v1024, %v1025
      %v1027 = vsel %vm1009, %v970, 0.0
      %v1028 = vadd.f32 %v1026, %v1027
      %v1029 = vsel %vm1009, %v971, 0.0
      %v1030 = vadd.f32 %v1028, %v1029
      %v1031 = vsel %vm1009, %v972, 0.0
      %v1032 = vadd.f32 %v1030, %v1031
      %v1033 = vsel %vm1009, %v973, 0.0
      %v1034 = vadd.f32 %v1032, %v1033
      %v1035 = vsel %vm1009, %v974, 0.0
      %v1036 = vadd.f32 %v1034, %v1035
      %v1037 = vsel %vm1009, %v975, 0.0
      %v1038 = vadd.f32 %v1036, %v1037
      %v1039 = vsel %vm1009, %v976, 0.0
      %v1040 = vadd.f32 %v1038, %v1039
      %v1041 = vsel %vm1009, %v977, 0.0
      %v1042 = vadd.f32 %v1040, %v1041
      %v1043 = vsel %vm1009, %v978, 0.0
      %v1044 = vadd.f32 %v1042, %v1043
      %v1045 = vsel %vm1009, %v979, 0.0
      %v1046 = vadd.f32 %v1044, %v1045
      %v1047 = vsel %vm1009, %v980, 0.0
      %v1048 = vadd.f32 %v1046, %v1047
      %v1049 = vsel %vm1009, %v981, 0.0
      %v1050 = vadd.f32 %v1048, %v1049
      %v1051 = vsel %vm1009, %v982, 0.0
      %v1052 = vadd.f32 %v1050, %v1051
      %v1053 = vsel %vm1009, %v983, 0.0
      %v1054 = vadd.f32 %v1052, %v1053
      %v1055 = vsel %vm1009, %v984, 0.0
      %v1056 = vadd.f32 %v1054, %v1055
      %v1057 = vsel %vm1009, %v985, 0.0
      %v1058 = vadd.f32 %v1056, %v1057
      %v1059 = vsel %vm1009, %v986, 0.0
      %v1060 = vadd.f32 %v1058, %v1059
      %v1061 = vsel %vm1009, %v987, 0.0
      %v1062 = vadd.f32 %v1060, %v1061
      %v1063 = vsel %vm1009, %v988, 0.0
      %v1064 = vadd.f32 %v1062, %v1063
      %v1065 = vsel %vm1009, %v989, 0.0
      %v1066 = vadd.f32 %v1064, %v1065
      %v1067 = vsel %vm1009, %v990, 0.0
      %v1068 = vadd.f32 %v1066, %v1067
      %v1069 = vsel %vm1009, %v991, 0.0
      %v1070 = vadd.f32 %v1068, %v1069
      %v1071 = vsel %vm1009, %v992, 0.0
      %v1072 = vadd.f32 %v1070, %v1071
      %v1073 = vrot.slane %v1072, 4
      %v1074 = vadd.f32 %v1072, %v1073
      %v1075 = vrot.slane %v1074, 2
      %v1076 = vadd.f32 %v1074, %v1075
      %v1077 = vrot.slane %v1076, 1
      %v1078 = vadd.f32 %v1076, %v1077
      %v1079 = vrcp.pop 256.0
      %v1080 = vmul.f32 %v1078, %v1079
      %v1081 = vpack.c.bf16 %v1080, %v1080
      %v1086 = vunpack.c.l.b16 %v583
      %v1087 = vunpack.c.l.b16 %v584
      %v1088 = vunpack.c.l.b16 %v585
      %v1089 = vunpack.c.l.b16 %v586
      %v1090 = vpack.c.b16 %v1087, %v1086
      %v1091 = vpack.c.b16 %v1089, %v1088
      %v1095 = vsel %vm1009, %v1081, 0
      %1097 = vmatprep.subr.bf16.mxu0 0
      %1098 = vmatpush1.bf16.msra.mxu0 %v1090
      %1099 = vmatprep.subr.bf16.mxu0 0
      %1100 = vmatpush1.bf16.msra.mxu0 %v1091
      %1101 = vmatprep.subr.bf16.mxu0 0
      %1102 = vmatpush1.bf16.msra.mxu0 0
      %1103 = vmatprep.subr.bf16.mxu0 0
      %1104 = vmatpush1.bf16.msra.mxu0 0
      %1105 = vmatprep.subr.bf16.mxu0 0
      %1106 = vmatpush1.bf16.msra.mxu0 0
      %1107 = vmatprep.subr.bf16.mxu0 0
      %1108 = vmatpush1.bf16.msra.mxu0 0
      %1109 = vmatprep.subr.bf16.mxu0 0
      %1110 = vmatpush1.bf16.msra.mxu0 0
      %1111 = vmatprep.subr.bf16.mxu0 0
      %1112 = vmatpush1.bf16.msra.mxu0 0
      %1113 = vmatprep.subr.bf16.mxu0 0
      %1114 = vmatpush1.bf16.msra.mxu0 0
      %1115 = vmatprep.subr.bf16.mxu0 0
      %1116 = vmatpush1.bf16.msra.mxu0 0
      %1117 = vmatprep.subr.bf16.mxu0 0
      %1118 = vmatpush1.bf16.msra.mxu0 0
      %1119 = vmatprep.subr.bf16.mxu0 0
      %1120 = vmatpush1.bf16.msra.mxu0 0
      %1121 = vmatprep.subr.bf16.mxu0 0
      %1122 = vmatpush1.bf16.msra.mxu0 0
      %1123 = vmatprep.subr.bf16.mxu0 0
      %1124 = vmatpush1.bf16.msra.mxu0 0
      %1125 = vmatprep.subr.bf16.mxu0 0
      %1126 = vmatpush1.bf16.msra.mxu0 0
      %1127 = vmatprep.subr.bf16.mxu0 0
      %1128 = vmatpush1.bf16.msra.mxu0 0
      %1129 = vmatprep.mubr.bf16.mxu0 0
      %1130 = vmatmul.mubr.bf16.gmra.mrb[0].mxu0 %v1095
      %v1131 = vpop.f32.mrb[0].mxu0
      %v1132 = vadd.f32 %v587, %v1131
      %v1133 = vpop.f32.mrb[0].mxu0
      %v1134 = vpop.f32.mrb[0].mxu0
      %v1135 = vpop.f32.mrb[0].mxu0
      %1136 = vdwg.mxu0
      %v1137 = vmax.f32 %v1132, 0.0
      %v1138 = vpack.c.bf16 %v1137, %v1137
      %v1143 = vunpack.c.l.b16 %v588
      %v1144 = vunpack.c.l.b16 %v589
      %v1145 = vunpack.c.l.b16 %v590
      %v1146 = vunpack.c.l.b16 %v591
      %v1147 = vpack.c.b16 %v1144, %v1143
      %v1148 = vpack.c.b16 %v1146, %v1145
      %v1152 = vsel %vm1009, %v1138, 0
      %1154 = vmatprep.subr.bf16.mxu0 0
      %1155 = vmatpush1.bf16.msra.mxu0 %v1147
      %1156 = vmatprep.subr.bf16.mxu0 0
      %1157 = vmatpush1.bf16.msra.mxu0 %v1148
      %1158 = vmatprep.subr.bf16.mxu0 0
      %1159 = vmatpush1.bf16.msra.mxu0 0
      %1160 = vmatprep.subr.bf16.mxu0 0
      %1161 = vmatpush1.bf16.msra.mxu0 0
      %1162 = vmatprep.subr.bf16.mxu0 0
      %1163 = vmatpush1.bf16.msra.mxu0 0
      %1164 = vmatprep.subr.bf16.mxu0 0
      %1165 = vmatpush1.bf16.msra.mxu0 0
      %1166 = vmatprep.subr.bf16.mxu0 0
      %1167 = vmatpush1.bf16.msra.mxu0 0
      %1168 = vmatprep.subr.bf16.mxu0 0
      %1169 = vmatpush1.bf16.msra.mxu0 0
      %1170 = vmatprep.subr.bf16.mxu0 0
      %1171 = vmatpush1.bf16.msra.mxu0 0
      %1172 = vmatprep.subr.bf16.mxu0 0
      %1173 = vmatpush1.bf16.msra.mxu0 0
      %1174 = vmatprep.subr.bf16.mxu0 0
      %1175 = vmatpush1.bf16.msra.mxu0 0
      %1176 = vmatprep.subr.bf16.mxu0 0
      %1177 = vmatpush1.bf16.msra.mxu0 0
      %1178 = vmatprep.subr.bf16.mxu0 0
      %1179 = vmatpush1.bf16.msra.mxu0 0
      %1180 = vmatprep.subr.bf16.mxu0 0
      %1181 = vmatpush1.bf16.msra.mxu0 0
      %1182 = vmatprep.subr.bf16.mxu0 0
      %1183 = vmatpush1.bf16.msra.mxu0 0
      %1184 = vmatprep.subr.bf16.mxu0 0
      %1185 = vmatpush1.bf16.msra.mxu0 0
      %1186 = vmatprep.mubr.bf16.mxu0 0
      %1187 = vmatmul.mubr.bf16.gmra.mrb[0].mxu0 %v1152
      %v1188 = vpop.f32.mrb[0].mxu0
      %v1189 = vadd.f32 %v592, %v1188
      %v1190 = vpop.f32.mrb[0].mxu0
      %v1191 = vpop.f32.mrb[0].mxu0
      %v1192 = vpop.f32.mrb[0].mxu0
      %1193 = vdwg.mxu0
      %v1194 = vmax.f32 %v1189, 0.0
      %v1195 = vpack.c.bf16 %v1194, %v1194
      %v1200 = vunpack.c.l.b16 %v593
      %v1201 = vunpack.c.l.b16 %v594
      %v1202 = vunpack.c.l.b16 %v595
      %v1203 = vunpack.c.l.b16 %v596
      %v1204 = vpack.c.b16 %v1201, %v1200
      %v1205 = vpack.c.b16 %v1203, %v1202
      %v1209 = vsel %vm1009, %v1195, 0
      %1211 = vmatprep.subr.bf16.mxu0 0
      %1212 = vmatpush1.bf16.msra.mxu0 %v1204
      %1213 = vmatprep.subr.bf16.mxu0 0
      %1214 = vmatpush1.bf16.msra.mxu0 %v1205
      %1215 = vmatprep.subr.bf16.mxu0 0
      %1216 = vmatpush1.bf16.msra.mxu0 0
      %1217 = vmatprep.subr.bf16.mxu0 0
      %1218 = vmatpush1.bf16.msra.mxu0 0
      %1219 = vmatprep.subr.bf16.mxu0 0
      %1220 = vmatpush1.bf16.msra.mxu0 0
      %1221 = vmatprep.subr.bf16.mxu0 0
      %1222 = vmatpush1.bf16.msra.mxu0 0
      %1223 = vmatprep.subr.bf16.mxu0 0
      %1224 = vmatpush1.bf16.msra.mxu0 0
      %1225 = vmatprep.subr.bf16.mxu0 0
      %1226 = vmatpush1.bf16.msra.mxu0 0
      %1227 = vmatprep.subr.bf16.mxu0 0
      %1228 = vmatpush1.bf16.msra.mxu0 0
      %1229 = vmatprep.subr.bf16.mxu0 0
      %1230 = vmatpush1.bf16.msra.mxu0 0
      %1231 = vmatprep.subr.bf16.mxu0 0
      %1232 = vmatpush1.bf16.msra.mxu0 0
      %1233 = vmatprep.subr.bf16.mxu0 0
      %1234 = vmatpush1.bf16.msra.mxu0 0
      %1235 = vmatprep.subr.bf16.mxu0 0
      %1236 = vmatpush1.bf16.msra.mxu0 0
      %1237 = vmatprep.subr.bf16.mxu0 0
      %1238 = vmatpush1.bf16.msra.mxu0 0
      %1239 = vmatprep.subr.bf16.mxu0 0
      %1240 = vmatpush1.bf16.msra.mxu0 0
      %1241 = vmatprep.subr.bf16.mxu0 0
      %1242 = vmatpush1.bf16.msra.mxu0 0
      %1243 = vmatprep.mubr.bf16.mxu0 0
      %1244 = vmatmul.mubr.bf16.gmra.mrb[0].mxu0 %v1209
      %v1245 = vpop.f32.mrb[0].mxu0
      %v1246 = vadd.f32 %v597, %v1245
      %v1247 = vpop.f32.mrb[0].mxu0
      %v1248 = vpop.f32.mrb[0].mxu0
      %v1249 = vpop.f32.mrb[0].mxu0
      %1250 = vdwg.mxu0
      %1251 = vmatprep.subr.bf16.mxu0 0
      %1252 = vmatpush1.bf16.msra.mxu0 %v993
      %1253 = vmatprep.subr.bf16.mxu0 0
      %1254 = vmatpush1.bf16.msra.mxu0 %v994
      %1255 = vmatprep.subr.bf16.mxu0 0
      %1256 = vmatpush1.bf16.msra.mxu0 %v995
      %1257 = vmatprep.subr.bf16.mxu0 0
      %1258 = vmatpush1.bf16.msra.mxu0 %v996
      %1259 = vmatprep.subr.bf16.mxu0 0
      %1260 = vmatpush1.bf16.msra.mxu0 %v997
      %1261 = vmatprep.subr.bf16.mxu0 0
      %1262 = vmatpush1.bf16.msra.mxu0 %v998
      %1263 = vmatprep.subr.bf16.mxu0 0
      %1264 = vmatpush1.bf16.msra.mxu0 %v999
      %1265 = vmatprep.subr.bf16.mxu0 0
      %1266 = vmatpush1.bf16.msra.mxu0 %v1000
      %1267 = vmatprep.subr.bf16.mxu0 0
      %1268 = vmatpush1.bf16.msra.mxu0 %v1001
      %1269 = vmatprep.subr.bf16.mxu0 0
      %1270 = vmatpush1.bf16.msra.mxu0 %v1002
      %1271 = vmatprep.subr.bf16.mxu0 0
      %1272 = vmatpush1.bf16.msra.mxu0 %v1003
      %1273 = vmatprep.subr.bf16.mxu0 0
      %1274 = vmatpush1.bf16.msra.mxu0 %v1004
      %1275 = vmatprep.subr.bf16.mxu0 0
      %1276 = vmatpush1.bf16.msra.mxu0 %v1005
      %1277 = vmatprep.subr.bf16.mxu0 0
      %1278 = vmatpush1.bf16.msra.mxu0 %v1006
      %1279 = vmatprep.subr.bf16.mxu0 0
      %1280 = vmatpush1.bf16.msra.mxu0 %v1007
      %1281 = vmatprep.subr.bf16.mxu0 0
      %1282 = vmatpush1.bf16.msra.mxu0 %v1008
      %1283 = vmatprep.mubr.bf16.mxu0 %v625
      %1284 = vmatmul.mubr.bf16.gmra.mrb[0].mxu0 %v624
      %v1285 = vpop.f32.mrb[0].mxu0
      %v1286 = vadd.f32 0.0, %v1285
      %v1287 = vpop.f32.mrb[0].mxu0
      %v1288 = vpop.f32.mrb[0].mxu0
      %v1289 = vpop.f32.mrb[0].mxu0
      %1290 = vdwg.mxu0
      %v1291 = vmul.f32 %v1286, %v628
      %v1292 = vpack.c.bf16 %v1291, %v1291
      %v1294 = vlaneseq
      %v1295 = vshrl.u32 %v1294, 7
      %v1296 = vsub.s32 0, %v1295
      %v1297 = vrot.slane %v602, %v1296
      %v1303 = vunpack.c.l.b16 %v598
      %v1304 = vunpack.c.l.b16 %v599
      %v1305 = vunpack.c.l.b16 %v600
      %v1306 = vunpack.c.l.b16 %v601
      %v1307 = vpack.c.b16 %v1304, %v1303
      %v1308 = vpack.c.b16 %v1306, %v1305
      %v1312 = vsel %vm1009, %v1292, 0
      %1314 = vmatprep.subr.bf16.mxu0 0
      %1315 = vmatpush1.bf16.msra.mxu0 %v1307
      %1316 = vmatprep.subr.bf16.mxu0 0
      %1317 = vmatpush1.bf16.msra.mxu0 %v1308
      %1318 = vmatprep.subr.bf16.mxu0 0
      %1319 = vmatpush1.bf16.msra.mxu0 0
      %1320 = vmatprep.subr.bf16.mxu0 0
      %1321 = vmatpush1.bf16.msra.mxu0 0
      %1322 = vmatprep.subr.bf16.mxu0 0
      %1323 = vmatpush1.bf16.msra.mxu0 0
      %1324 = vmatprep.subr.bf16.mxu0 0
      %1325 = vmatpush1.bf16.msra.mxu0 0
      %1326 = vmatprep.subr.bf16.mxu0 0
      %1327 = vmatpush1.bf16.msra.mxu0 0
      %1328 = vmatprep.subr.bf16.mxu0 0
      %1329 = vmatpush1.bf16.msra.mxu0 0
      %1330 = vmatprep.subr.bf16.mxu0 0
      %1331 = vmatpush1.bf16.msra.mxu0 0
      %1332 = vmatprep.subr.bf16.mxu0 0
      %1333 = vmatpush1.bf16.msra.mxu0 0
      %1334 = vmatprep.subr.bf16.mxu0 0
      %1335 = vmatpush1.bf16.msra.mxu0 0
      %1336 = vmatprep.subr.bf16.mxu0 0
      %1337 = vmatpush1.bf16.msra.mxu0 0
      %1338 = vmatprep.subr.bf16.mxu0 0
      %1339 = vmatpush1.bf16.msra.mxu0 0
      %1340 = vmatprep.subr.bf16.mxu0 0
      %1341 = vmatpush1.bf16.msra.mxu0 0
      %1342 = vmatprep.subr.bf16.mxu0 0
      %1343 = vmatpush1.bf16.msra.mxu0 0
      %1344 = vmatprep.subr.bf16.mxu0 0
      %1345 = vmatpush1.bf16.msra.mxu0 0
      %1346 = vmatprep.mubr.bf16.mxu0 0
      %1347 = vmatmul.mubr.bf16.gmra.mrb[0].mxu0 %v1312
      %v1348 = vpop.f32.mrb[0].mxu0
      %v1349 = vadd.f32 %v1297, %v1348
      %v1350 = vpop.f32.mrb[0].mxu0
      %v1351 = vpop.f32.mrb[0].mxu0
      %v1352 = vpop.f32.mrb[0].mxu0
      %1353 = vdwg.mxu0
      %v1354 = vld [vmem:[%s563] sm:$0xf]
      %v1355 = vld [vmem:[%s563 + $0x4] sm:$0xf]
      %v1356 = vld [vmem:[%s563 + $0x8] sm:$0xf]
      %v1357 = vld [vmem:[%s563 + $0xc] sm:$0xf]
      %v1358 = vld [vmem:[%s563 + $0x10] sm:$0xf]
      %v1359 = vld [vmem:[%s563 + $0x14] sm:$0xf]
      %v1360 = vld [vmem:[%s563 + $0x18] sm:$0xf]
      %v1361 = vld [vmem:[%s563 + $0x1c] sm:$0xf]
      %v1362 = vld [vmem:[%s563 + $0x20] sm:$0xf]
      %v1363 = vld [vmem:[%s563 + $0x24] sm:$0xf]
      %v1364 = vld [vmem:[%s563 + $0x28] sm:$0xf]
      %v1365 = vld [vmem:[%s563 + $0x2c] sm:$0xf]
      %v1366 = vld [vmem:[%s563 + $0x30] sm:$0xf]
      %v1367 = vld [vmem:[%s563 + $0x34] sm:$0xf]
      %v1368 = vld [vmem:[%s563 + $0x38] sm:$0xf]
      %v1369 = vld [vmem:[%s563 + $0x3c] sm:$0xf]
      %v1370 = vld [vmem:[%s563 + $0x40] sm:$0xf]
      %v1371 = vld [vmem:[%s563 + $0x44] sm:$0xf]
      %v1372 = vld [vmem:[%s563 + $0x48] sm:$0xf]
      %v1373 = vld [vmem:[%s563 + $0x4c] sm:$0xf]
      %v1374 = vld [vmem:[%s563 + $0x50] sm:$0xf]
      %v1375 = vld [vmem:[%s563 + $0x54] sm:$0xf]
      %v1376 = vld [vmem:[%s563 + $0x58] sm:$0xf]
      %v1377 = vld [vmem:[%s563 + $0x5c] sm:$0xf]
      %v1378 = vld [vmem:[%s563 + $0x60] sm:$0xf]
      %v1379 = vld [vmem:[%s563 + $0x64] sm:$0xf]
      %v1380 = vld [vmem:[%s563 + $0x68] sm:$0xf]
      %v1381 = vld [vmem:[%s563 + $0x6c] sm:$0xf]
      %v1382 = vld [vmem:[%s563 + $0x70] sm:$0xf]
      %v1383 = vld [vmem:[%s563 + $0x74] sm:$0xf]
      %v1384 = vld [vmem:[%s563 + $0x78] sm:$0xf]
      %v1385 = vld [vmem:[%s563 + $0x7c] sm:$0xf]
      %v1418 = vunpack.c.l.b16 %v1354
      %v1419 = vunpack.c.l.b16 %v1355
      %v1420 = vunpack.c.l.b16 %v1356
      %v1421 = vunpack.c.l.b16 %v1357
      %v1422 = vunpack.c.l.b16 %v1358
      %v1423 = vunpack.c.l.b16 %v1359
      %v1424 = vunpack.c.l.b16 %v1360
      %v1425 = vunpack.c.l.b16 %v1361
      %v1426 = vunpack.c.l.b16 %v1362
      %v1427 = vunpack.c.l.b16 %v1363
      %v1428 = vunpack.c.l.b16 %v1364
      %v1429 = vunpack.c.l.b16 %v1365
      %v1430 = vunpack.c.l.b16 %v1366
      %v1431 = vunpack.c.l.b16 %v1367
      %v1432 = vunpack.c.l.b16 %v1368
      %v1433 = vunpack.c.l.b16 %v1369
      %v1434 = vunpack.c.l.b16 %v1370
      %v1435 = vunpack.c.l.b16 %v1371
      %v1436 = vunpack.c.l.b16 %v1372
      %v1437 = vunpack.c.l.b16 %v1373
      %v1438 = vunpack.c.l.b16 %v1374
      %v1439 = vunpack.c.l.b16 %v1375
      %v1440 = vunpack.c.l.b16 %v1376
      %v1441 = vunpack.c.l.b16 %v1377
      %v1442 = vunpack.c.l.b16 %v1378
      %v1443 = vunpack.c.l.b16 %v1379
      %v1444 = vunpack.c.l.b16 %v1380
      %v1445 = vunpack.c.l.b16 %v1381
      %v1446 = vunpack.c.l.b16 %v1382
      %v1447 = vunpack.c.l.b16 %v1383
      %v1448 = vunpack.c.l.b16 %v1384
      %v1449 = vunpack.c.l.b16 %v1385
      %v1450 = vpack.c.b16 %v1419, %v1418
      %v1451 = vpack.c.b16 %v1421, %v1420
      %v1452 = vpack.c.b16 %v1423, %v1422
      %v1453 = vpack.c.b16 %v1425, %v1424
      %v1454 = vpack.c.b16 %v1427, %v1426
      %v1455 = vpack.c.b16 %v1429, %v1428
      %v1456 = vpack.c.b16 %v1431, %v1430
      %v1457 = vpack.c.b16 %v1433, %v1432
      %v1458 = vpack.c.b16 %v1435, %v1434
      %v1459 = vpack.c.b16 %v1437, %v1436
      %v1460 = vpack.c.b16 %v1439, %v1438
      %v1461 = vpack.c.b16 %v1441, %v1440
      %v1462 = vpack.c.b16 %v1443, %v1442
      %v1463 = vpack.c.b16 %v1445, %v1444
      %v1464 = vpack.c.b16 %v1447, %v1446
      %v1465 = vpack.c.b16 %v1449, %v1448
      %v1467 = vsel %vm747, %v1450, 0
      %v1470 = vsel %vm747, %v1451, 0
      %v1473 = vsel %vm747, %v1452, 0
      %v1476 = vsel %vm747, %v1453, 0
      %v1479 = vsel %vm747, %v1454, 0
      %v1482 = vsel %vm747, %v1455, 0
      %v1485 = vsel %vm747, %v1456, 0
      %v1488 = vsel %vm747, %v1457, 0
      %v1491 = vsel %vm747, %v1458, 0
      %v1494 = vsel %vm747, %v1459, 0
      %v1497 = vsel %vm747, %v1460, 0
      %v1500 = vsel %vm747, %v1461, 0
      %v1503 = vsel %vm747, %v1462, 0
      %v1506 = vsel %vm747, %v1463, 0
      %v1509 = vsel %vm747, %v1464, 0
      %v1512 = vsel %vm747, %v1465, 0
      %1514 = vmatprep.subr.bf16.mxu0 0
      %1515 = vmatpush1.bf16.msra.mxu0 %v798
      %1516 = vmatprep.subr.bf16.mxu0 0
      %1517 = vmatpush1.bf16.msra.mxu0 0
      %1518 = vmatprep.subr.bf16.mxu0 0
      %1519 = vmatpush1.bf16.msra.mxu0 0
      %1520 = vmatprep.subr.bf16.mxu0 0
      %1521 = vmatpush1.bf16.msra.mxu0 0
      %1522 = vmatprep.subr.bf16.mxu0 0
      %1523 = vmatpush1.bf16.msra.mxu0 0
      %1524 = vmatprep.subr.bf16.mxu0 0
      %1525 = vmatpush1.bf16.msra.mxu0 0
      %1526 = vmatprep.subr.bf16.mxu0 0
      %1527 = vmatpush1.bf16.msra.mxu0 0
      %1528 = vmatprep.subr.bf16.mxu0 0
      %1529 = vmatpush1.bf16.msra.mxu0 0
      %1530 = vmatprep.subr.bf16.mxu0 0
      %1531 = vmatpush1.bf16.msra.mxu0 0
      %1532 = vmatprep.subr.bf16.mxu0 0
      %1533 = vmatpush1.bf16.msra.mxu0 0
      %1534 = vmatprep.subr.bf16.mxu0 0
      %1535 = vmatpush1.bf16.msra.mxu0 0
      %1536 = vmatprep.subr.bf16.mxu0 0
      %1537 = vmatpush1.bf16.msra.mxu0 0
      %1538 = vmatprep.subr.bf16.mxu0 0
      %1539 = vmatpush1.bf16.msra.mxu0 0
      %1540 = vmatprep.subr.bf16.mxu0 0
      %1541 = vmatpush1.bf16.msra.mxu0 0
      %1542 = vmatprep.subr.bf16.mxu0 0
      %1543 = vmatpush1.bf16.msra.mxu0 0
      %1544 = vmatprep.subr.bf16.mxu0 0
      %1545 = vmatpush1.bf16.msra.mxu0 0
      %1546 = vmatprep.mubr.bf16.mxu0 0
      %1547 = vmatmul.mubr.bf16.gmra.mrb[0].mxu0 %v1467
      %v1548 = vpop.f32.mrb[0].mxu0
      %v1549 = vadd.f32 %v665, %v1548
      %v1550 = vpop.f32.mrb[0].mxu0
      %v1551 = vpop.f32.mrb[0].mxu0
      %v1552 = vadd.f32 %v665, %v1551
      %v1553 = vpop.f32.mrb[0].mxu0
      %1554 = vmatprep.mubr.bf16.mxu0 0
      %1555 = vmatmul.mubr.bf16.gmra.mrb[0].mxu0 %v1470
      %v1556 = vpop.f32.mrb[0].mxu0
      %v1557 = vadd.f32 %v665, %v1556
      %v1558 = vpop.f32.mrb[0].mxu0
      %v1559 = vpop.f32.mrb[0].mxu0
      %v1560 = vadd.f32 %v665, %v1559
      %v1561 = vpop.f32.mrb[0].mxu0
      %1562 = vmatprep.mubr.bf16.mxu0 0
      %1563 = vmatmul.mubr.bf16.gmra.mrb[0].mxu0 %v1473
      %v1564 = vpop.f32.mrb[0].mxu0
      %v1565 = vadd.f32 %v665, %v1564
      %v1566 = vpop.f32.mrb[0].mxu0
      %v1567 = vpop.f32.mrb[0].mxu0
      %v1568 = vadd.f32 %v665, %v1567
      %v1569 = vpop.f32.mrb[0].mxu0
      %1570 = vmatprep.mubr.bf16.mxu0 0
      %1571 = vmatmul.mubr.bf16.gmra.mrb[0].mxu0 %v1476
      %v1572 = vpop.f32.mrb[0].mxu0
      %v1573 = vadd.f32 %v665, %v1572
      %v1574 = vpop.f32.mrb[0].mxu0
      %v1575 = vpop.f32.mrb[0].mxu0
      %v1576 = vadd.f32 %v665, %v1575
      %v1577 = vpop.f32.mrb[0].mxu0
      %1578 = vmatprep.mubr.bf16.mxu0 0
      %1579 = vmatmul.mubr.bf16.gmra.mrb[0].mxu0 %v1479
      %v1580 = vpop.f32.mrb[0].mxu0
      %v1581 = vadd.f32 %v665, %v1580
      %v1582 = vpop.f32.mrb[0].mxu0
      %v1583 = vpop.f32.mrb[0].mxu0
      %v1584 = vadd.f32 %v665, %v1583
      %v1585 = vpop.f32.mrb[0].mxu0
      %1586 = vmatprep.mubr.bf16.mxu0 0
      %1587 = vmatmul.mubr.bf16.gmra.mrb[0].mxu0 %v1482
      %v1588 = vpop.f32.mrb[0].mxu0
      %v1589 = vadd.f32 %v665, %v1588
      %v1590 = vpop.f32.mrb[0].mxu0
      %v1591 = vpop.f32.mrb[0].mxu0
      %v1592 = vadd.f32 %v665, %v1591
      %v1593 = vpop.f32.mrb[0].mxu0
      %1594 = vmatprep.mubr.bf16.mxu0 0
      %1595 = vmatmul.mubr.bf16.gmra.mrb[0].mxu0 %v1485
      %v1596 = vpop.f32.mrb[0].mxu0
      %v1597 = vadd.f32 %v665, %v1596
      %v1598 = vpop.f32.mrb[0].mxu0
      %v1599 = vpop.f32.mrb[0].mxu0
      %v1600 = vadd.f32 %v665, %v1599
      %v1601 = vpop.f32.mrb[0].mxu0
      %1602 = vmatprep.mubr.bf16.mxu0 0
      %1603 = vmatmul.mubr.bf16.gmra.mrb[0].mxu0 %v1488
      %v1604 = vpop.f32.mrb[0].mxu0
      %v1605 = vadd.f32 %v665, %v1604
      %v1606 = vpop.f32.mrb[0].mxu0
      %v1607 = vpop.f32.mrb[0].mxu0
      %v1608 = vadd.f32 %v665, %v1607
      %v1609 = vpop.f32.mrb[0].mxu0
      %1610 = vmatprep.mubr.bf16.mxu0 0
      %1611 = vmatmul.mubr.bf16.gmra.mrb[0].mxu0 %v1491
      %v1612 = vpop.f32.mrb[0].mxu0
      %v1613 = vadd.f32 %v665, %v1612
      %v1614 = vpop.f32.mrb[0].mxu0
      %v1615 = vpop.f32.mrb[0].mxu0
      %v1616 = vadd.f32 %v665, %v1615
      %v1617 = vpop.f32.mrb[0].mxu0
      %1618 = vmatprep.mubr.bf16.mxu0 0
      %1619 = vmatmul.mubr.bf16.gmra.mrb[0].mxu0 %v1494
      %v1620 = vpop.f32.mrb[0].mxu0
      %v1621 = vadd.f32 %v665, %v1620
      %v1622 = vpop.f32.mrb[0].mxu0
      %v1623 = vpop.f32.mrb[0].mxu0
      %v1624 = vadd.f32 %v665, %v1623
      %v1625 = vpop.f32.mrb[0].mxu0
      %1626 = vmatprep.mubr.bf16.mxu0 0
      %1627 = vmatmul.mubr.bf16.gmra.mrb[0].mxu0 %v1497
      %v1628 = vpop.f32.mrb[0].mxu0
      %v1629 = vadd.f32 %v665, %v1628
      %v1630 = vpop.f32.mrb[0].mxu0
      %v1631 = vpop.f32.mrb[0].mxu0
      %v1632 = vadd.f32 %v665, %v1631
      %v1633 = vpop.f32.mrb[0].mxu0
      %1634 = vmatprep.mubr.bf16.mxu0 0
      %1635 = vmatmul.mubr.bf16.gmra.mrb[0].mxu0 %v1500
      %v1636 = vpop.f32.mrb[0].mxu0
      %v1637 = vadd.f32 %v665, %v1636
      %v1638 = vpop.f32.mrb[0].mxu0
      %v1639 = vpop.f32.mrb[0].mxu0
      %v1640 = vadd.f32 %v665, %v1639
      %v1641 = vpop.f32.mrb[0].mxu0
      %1642 = vmatprep.mubr.bf16.mxu0 0
      %1643 = vmatmul.mubr.bf16.gmra.mrb[0].mxu0 %v1503
      %v1644 = vpop.f32.mrb[0].mxu0
      %v1645 = vadd.f32 %v665, %v1644
      %v1646 = vpop.f32.mrb[0].mxu0
      %v1647 = vpop.f32.mrb[0].mxu0
      %v1648 = vadd.f32 %v665, %v1647
      %v1649 = vpop.f32.mrb[0].mxu0
      %1650 = vmatprep.mubr.bf16.mxu0 0
      %1651 = vmatmul.mubr.bf16.gmra.mrb[0].mxu0 %v1506
      %v1652 = vpop.f32.mrb[0].mxu0
      %v1653 = vadd.f32 %v665, %v1652
      %v1654 = vpop.f32.mrb[0].mxu0
      %v1655 = vpop.f32.mrb[0].mxu0
      %v1656 = vadd.f32 %v665, %v1655
      %v1657 = vpop.f32.mrb[0].mxu0
      %1658 = vmatprep.mubr.bf16.mxu0 0
      %1659 = vmatmul.mubr.bf16.gmra.mrb[0].mxu0 %v1509
      %v1660 = vpop.f32.mrb[0].mxu0
      %v1661 = vadd.f32 %v665, %v1660
      %v1662 = vpop.f32.mrb[0].mxu0
      %v1663 = vpop.f32.mrb[0].mxu0
      %v1664 = vadd.f32 %v665, %v1663
      %v1665 = vpop.f32.mrb[0].mxu0
      %1666 = vmatprep.mubr.bf16.mxu0 0
      %1667 = vmatmul.mubr.bf16.gmra.mrb[0].mxu0 %v1512
      %v1668 = vpop.f32.mrb[0].mxu0
      %v1669 = vadd.f32 %v665, %v1668
      %v1670 = vpop.f32.mrb[0].mxu0
      %v1671 = vpop.f32.mrb[0].mxu0
      %v1672 = vadd.f32 %v665, %v1671
      %v1673 = vpop.f32.mrb[0].mxu0
      %1674 = vdwg.mxu0
      %v1675 = vmax.f32 %v1549, 0.0
      %v1676 = vmax.f32 %v1552, 0.0
      %v1677 = vmax.f32 %v1557, 0.0
      %v1678 = vmax.f32 %v1560, 0.0
      %v1679 = vmax.f32 %v1565, 0.0
      %v1680 = vmax.f32 %v1568, 0.0
      %v1681 = vmax.f32 %v1573, 0.0
      %v1682 = vmax.f32 %v1576, 0.0
      %v1683 = vmax.f32 %v1581, 0.0
      %v1684 = vmax.f32 %v1584, 0.0
      %v1685 = vmax.f32 %v1589, 0.0
      %v1686 = vmax.f32 %v1592, 0.0
      %v1687 = vmax.f32 %v1597, 0.0
      %v1688 = vmax.f32 %v1600, 0.0
      %v1689 = vmax.f32 %v1605, 0.0
      %v1690 = vmax.f32 %v1608, 0.0
      %v1691 = vmax.f32 %v1613, 0.0
      %v1692 = vmax.f32 %v1616, 0.0
      %v1693 = vmax.f32 %v1621, 0.0
      %v1694 = vmax.f32 %v1624, 0.0
      %v1695 = vmax.f32 %v1629, 0.0
      %v1696 = vmax.f32 %v1632, 0.0
      %v1697 = vmax.f32 %v1637, 0.0
      %v1698 = vmax.f32 %v1640, 0.0
      %v1699 = vmax.f32 %v1645, 0.0
      %v1700 = vmax.f32 %v1648, 0.0
      %v1701 = vmax.f32 %v1653, 0.0
      %v1702 = vmax.f32 %v1656, 0.0
      %v1703 = vmax.f32 %v1661, 0.0
      %v1704 = vmax.f32 %v1664, 0.0
      %v1705 = vmax.f32 %v1669, 0.0
      %v1706 = vmax.f32 %v1672, 0.0
      %v1707 = vpack.c.bf16 %v1676, %v1675
      %v1708 = vpack.c.bf16 %v1678, %v1677
      %v1709 = vpack.c.bf16 %v1680, %v1679
      %v1710 = vpack.c.bf16 %v1682, %v1681
      %v1711 = vpack.c.bf16 %v1684, %v1683
      %v1712 = vpack.c.bf16 %v1686, %v1685
      %v1713 = vpack.c.bf16 %v1688, %v1687
      %v1714 = vpack.c.bf16 %v1690, %v1689
      %v1715 = vpack.c.bf16 %v1692, %v1691
      %v1716 = vpack.c.bf16 %v1694, %v1693
      %v1717 = vpack.c.bf16 %v1696, %v1695
      %v1718 = vpack.c.bf16 %v1698, %v1697
      %v1719 = vpack.c.bf16 %v1700, %v1699
      %v1720 = vpack.c.bf16 %v1702, %v1701
      %v1721 = vpack.c.bf16 %v1704, %v1703
      %v1722 = vpack.c.bf16 %v1706, %v1705
      %v1723 = vsel %vm1009, %v1675, 0.0
      %v1724 = vsel %vm1009, %v1676, 0.0
      %v1725 = vadd.f32 %v1723, %v1724
      %v1726 = vsel %vm1009, %v1677, 0.0
      %v1727 = vadd.f32 %v1725, %v1726
      %v1728 = vsel %vm1009, %v1678, 0.0
      %v1729 = vadd.f32 %v1727, %v1728
      %v1730 = vsel %vm1009, %v1679, 0.0
      %v1731 = vadd.f32 %v1729, %v1730
      %v1732 = vsel %vm1009, %v1680, 0.0
      %v1733 = vadd.f32 %v1731, %v1732
      %v1734 = vsel %vm1009, %v1681, 0.0
      %v1735 = vadd.f32 %v1733, %v1734
      %v1736 = vsel %vm1009, %v1682, 0.0
      %v1737 = vadd.f32 %v1735, %v1736
      %v1738 = vsel %vm1009, %v1683, 0.0
      %v1739 = vadd.f32 %v1737, %v1738
      %v1740 = vsel %vm1009, %v1684, 0.0
      %v1741 = vadd.f32 %v1739, %v1740
      %v1742 = vsel %vm1009, %v1685, 0.0
      %v1743 = vadd.f32 %v1741, %v1742
      %v1744 = vsel %vm1009, %v1686, 0.0
      %v1745 = vadd.f32 %v1743, %v1744
      %v1746 = vsel %vm1009, %v1687, 0.0
      %v1747 = vadd.f32 %v1745, %v1746
      %v1748 = vsel %vm1009, %v1688, 0.0
      %v1749 = vadd.f32 %v1747, %v1748
      %v1750 = vsel %vm1009, %v1689, 0.0
      %v1751 = vadd.f32 %v1749, %v1750
      %v1752 = vsel %vm1009, %v1690, 0.0
      %v1753 = vadd.f32 %v1751, %v1752
      %v1754 = vsel %vm1009, %v1691, 0.0
      %v1755 = vadd.f32 %v1753, %v1754
      %v1756 = vsel %vm1009, %v1692, 0.0
      %v1757 = vadd.f32 %v1755, %v1756
      %v1758 = vsel %vm1009, %v1693, 0.0
      %v1759 = vadd.f32 %v1757, %v1758
      %v1760 = vsel %vm1009, %v1694, 0.0
      %v1761 = vadd.f32 %v1759, %v1760
      %v1762 = vsel %vm1009, %v1695, 0.0
      %v1763 = vadd.f32 %v1761, %v1762
      %v1764 = vsel %vm1009, %v1696, 0.0
      %v1765 = vadd.f32 %v1763, %v1764
      %v1766 = vsel %vm1009, %v1697, 0.0
      %v1767 = vadd.f32 %v1765, %v1766
      %v1768 = vsel %vm1009, %v1698, 0.0
      %v1769 = vadd.f32 %v1767, %v1768
      %v1770 = vsel %vm1009, %v1699, 0.0
      %v1771 = vadd.f32 %v1769, %v1770
      %v1772 = vsel %vm1009, %v1700, 0.0
      %v1773 = vadd.f32 %v1771, %v1772
      %v1774 = vsel %vm1009, %v1701, 0.0
      %v1775 = vadd.f32 %v1773, %v1774
      %v1776 = vsel %vm1009, %v1702, 0.0
      %v1777 = vadd.f32 %v1775, %v1776
      %v1778 = vsel %vm1009, %v1703, 0.0
      %v1779 = vadd.f32 %v1777, %v1778
      %v1780 = vsel %vm1009, %v1704, 0.0
      %v1781 = vadd.f32 %v1779, %v1780
      %v1782 = vsel %vm1009, %v1705, 0.0
      %v1783 = vadd.f32 %v1781, %v1782
      %v1784 = vsel %vm1009, %v1706, 0.0
      %v1785 = vadd.f32 %v1783, %v1784
      %v1786 = vrot.slane %v1785, 4
      %v1787 = vadd.f32 %v1785, %v1786
      %v1788 = vrot.slane %v1787, 2
      %v1789 = vadd.f32 %v1787, %v1788
      %v1790 = vrot.slane %v1789, 1
      %v1791 = vadd.f32 %v1789, %v1790
      %v1792 = vmul.f32 %v1791, %v1079
      %v1793 = vpack.c.bf16 %v1792, %v1792
      %v1795 = vsel %vm1009, %v1793, 0
      %1797 = vmatprep.subr.bf16.mxu0 0
      %1798 = vmatpush1.bf16.msra.mxu0 %v1090
      %1799 = vmatprep.subr.bf16.mxu0 0
      %1800 = vmatpush1.bf16.msra.mxu0 %v1091
      %1801 = vmatprep.subr.bf16.mxu0 0
      %1802 = vmatpush1.bf16.msra.mxu0 0
      %1803 = vmatprep.subr.bf16.mxu0 0
      %1804 = vmatpush1.bf16.msra.mxu0 0
      %1805 = vmatprep.subr.bf16.mxu0 0
      %1806 = vmatpush1.bf16.msra.mxu0 0
      %1807 = vmatprep.subr.bf16.mxu0 0
      %1808 = vmatpush1.bf16.msra.mxu0 0
      %1809 = vmatprep.subr.bf16.mxu0 0
      %1810 = vmatpush1.bf16.msra.mxu0 0
      %1811 = vmatprep.subr.bf16.mxu0 0
      %1812 = vmatpush1.bf16.msra.mxu0 0
      %1813 = vmatprep.subr.bf16.mxu0 0
      %1814 = vmatpush1.bf16.msra.mxu0 0
      %1815 = vmatprep.subr.bf16.mxu0 0
      %1816 = vmatpush1.bf16.msra.mxu0 0
      %1817 = vmatprep.subr.bf16.mxu0 0
      %1818 = vmatpush1.bf16.msra.mxu0 0
      %1819 = vmatprep.subr.bf16.mxu0 0
      %1820 = vmatpush1.bf16.msra.mxu0 0
      %1821 = vmatprep.subr.bf16.mxu0 0
      %1822 = vmatpush1.bf16.msra.mxu0 0
      %1823 = vmatprep.subr.bf16.mxu0 0
      %1824 = vmatpush1.bf16.msra.mxu0 0
      %1825 = vmatprep.subr.bf16.mxu0 0
      %1826 = vmatpush1.bf16.msra.mxu0 0
      %1827 = vmatprep.subr.bf16.mxu0 0
      %1828 = vmatpush1.bf16.msra.mxu0 0
      %1829 = vmatprep.mubr.bf16.mxu0 0
      %1830 = vmatmul.mubr.bf16.gmra.mrb[0].mxu0 %v1795
      %v1831 = vpop.f32.mrb[0].mxu0
      %v1832 = vadd.f32 %v587, %v1831
      %v1833 = vpop.f32.mrb[0].mxu0
      %v1834 = vpop.f32.mrb[0].mxu0
      %v1835 = vpop.f32.mrb[0].mxu0
      %1836 = vdwg.mxu0
      %v1837 = vmax.f32 %v1832, 0.0
      %v1838 = vpack.c.bf16 %v1837, %v1837
      %v1840 = vsel %vm1009, %v1838, 0
      %1842 = vmatprep.subr.bf16.mxu0 0
      %1843 = vmatpush1.bf16.msra.mxu0 %v1147
      %1844 = vmatprep.subr.bf16.mxu0 0
      %1845 = vmatpush1.bf16.msra.mxu0 %v1148
      %1846 = vmatprep.subr.bf16.mxu0 0
      %1847 = vmatpush1.bf16.msra.mxu0 0
      %1848 = vmatprep.subr.bf16.mxu0 0
      %1849 = vmatpush1.bf16.msra.mxu0 0
      %1850 = vmatprep.subr.bf16.mxu0 0
      %1851 = vmatpush1.bf16.msra.mxu0 0
      %1852 = vmatprep.subr.bf16.mxu0 0
      %1853 = vmatpush1.bf16.msra.mxu0 0
      %1854 = vmatprep.subr.bf16.mxu0 0
      %1855 = vmatpush1.bf16.msra.mxu0 0
      %1856 = vmatprep.subr.bf16.mxu0 0
      %1857 = vmatpush1.bf16.msra.mxu0 0
      %1858 = vmatprep.subr.bf16.mxu0 0
      %1859 = vmatpush1.bf16.msra.mxu0 0
      %1860 = vmatprep.subr.bf16.mxu0 0
      %1861 = vmatpush1.bf16.msra.mxu0 0
      %1862 = vmatprep.subr.bf16.mxu0 0
      %1863 = vmatpush1.bf16.msra.mxu0 0
      %1864 = vmatprep.subr.bf16.mxu0 0
      %1865 = vmatpush1.bf16.msra.mxu0 0
      %1866 = vmatprep.subr.bf16.mxu0 0
      %1867 = vmatpush1.bf16.msra.mxu0 0
      %1868 = vmatprep.subr.bf16.mxu0 0
      %1869 = vmatpush1.bf16.msra.mxu0 0
      %1870 = vmatprep.subr.bf16.mxu0 0
      %1871 = vmatpush1.bf16.msra.mxu0 0
      %1872 = vmatprep.subr.bf16.mxu0 0
      %1873 = vmatpush1.bf16.msra.mxu0 0
      %1874 = vmatprep.mubr.bf16.mxu0 0
      %1875 = vmatmul.mubr.bf16.gmra.mrb[0].mxu0 %v1840
      %v1876 = vpop.f32.mrb[0].mxu0
      %v1877 = vadd.f32 %v592, %v1876
      %v1878 = vpop.f32.mrb[0].mxu0
      %v1879 = vpop.f32.mrb[0].mxu0
      %v1880 = vpop.f32.mrb[0].mxu0
      %1881 = vdwg.mxu0
      %v1882 = vmax.f32 %v1877, 0.0
      %v1883 = vpack.c.bf16 %v1882, %v1882
      %v1885 = vsel %vm1009, %v1883, 0
      %1887 = vmatprep.subr.bf16.mxu0 0
      %1888 = vmatpush1.bf16.msra.mxu0 %v1204
      %1889 = vmatprep.subr.bf16.mxu0 0
      %1890 = vmatpush1.bf16.msra.mxu0 %v1205
      %1891 = vmatprep.subr.bf16.mxu0 0
      %1892 = vmatpush1.bf16.msra.mxu0 0
      %1893 = vmatprep.subr.bf16.mxu0 0
      %1894 = vmatpush1.bf16.msra.mxu0 0
      %1895 = vmatprep.subr.bf16.mxu0 0
      %1896 = vmatpush1.bf16.msra.mxu0 0
      %1897 = vmatprep.subr.bf16.mxu0 0
      %1898 = vmatpush1.bf16.msra.mxu0 0
      %1899 = vmatprep.subr.bf16.mxu0 0
      %1900 = vmatpush1.bf16.msra.mxu0 0
      %1901 = vmatprep.subr.bf16.mxu0 0
      %1902 = vmatpush1.bf16.msra.mxu0 0
      %1903 = vmatprep.subr.bf16.mxu0 0
      %1904 = vmatpush1.bf16.msra.mxu0 0
      %1905 = vmatprep.subr.bf16.mxu0 0
      %1906 = vmatpush1.bf16.msra.mxu0 0
      %1907 = vmatprep.subr.bf16.mxu0 0
      %1908 = vmatpush1.bf16.msra.mxu0 0
      %1909 = vmatprep.subr.bf16.mxu0 0
      %1910 = vmatpush1.bf16.msra.mxu0 0
      %1911 = vmatprep.subr.bf16.mxu0 0
      %1912 = vmatpush1.bf16.msra.mxu0 0
      %1913 = vmatprep.subr.bf16.mxu0 0
      %1914 = vmatpush1.bf16.msra.mxu0 0
      %1915 = vmatprep.subr.bf16.mxu0 0
      %1916 = vmatpush1.bf16.msra.mxu0 0
      %1917 = vmatprep.subr.bf16.mxu0 0
      %1918 = vmatpush1.bf16.msra.mxu0 0
      %1919 = vmatprep.mubr.bf16.mxu0 0
      %1920 = vmatmul.mubr.bf16.gmra.mrb[0].mxu0 %v1885
      %v1921 = vpop.f32.mrb[0].mxu0
      %v1922 = vadd.f32 %v597, %v1921
      %v1923 = vpop.f32.mrb[0].mxu0
      %v1924 = vpop.f32.mrb[0].mxu0
      %v1925 = vpop.f32.mrb[0].mxu0
      %1926 = vdwg.mxu0
      %1927 = vmatprep.subr.bf16.mxu0 0
      %1928 = vmatpush1.bf16.msra.mxu0 %v1707
      %1929 = vmatprep.subr.bf16.mxu0 0
      %1930 = vmatpush1.bf16.msra.mxu0 %v1708
      %1931 = vmatprep.subr.bf16.mxu0 0
      %1932 = vmatpush1.bf16.msra.mxu0 %v1709
      %1933 = vmatprep.subr.bf16.mxu0 0
      %1934 = vmatpush1.bf16.msra.mxu0 %v1710
      %1935 = vmatprep.subr.bf16.mxu0 0
      %1936 = vmatpush1.bf16.msra.mxu0 %v1711
      %1937 = vmatprep.subr.bf16.mxu0 0
      %1938 = vmatpush1.bf16.msra.mxu0 %v1712
      %1939 = vmatprep.subr.bf16.mxu0 0
      %1940 = vmatpush1.bf16.msra.mxu0 %v1713
      %1941 = vmatprep.subr.bf16.mxu0 0
      %1942 = vmatpush1.bf16.msra.mxu0 %v1714
      %1943 = vmatprep.subr.bf16.mxu0 0
      %1944 = vmatpush1.bf16.msra.mxu0 %v1715
      %1945 = vmatprep.subr.bf16.mxu0 0
      %1946 = vmatpush1.bf16.msra.mxu0 %v1716
      %1947 = vmatprep.subr.bf16.mxu0 0
      %1948 = vmatpush1.bf16.msra.mxu0 %v1717
      %1949 = vmatprep.subr.bf16.mxu0 0
      %1950 = vmatpush1.bf16.msra.mxu0 %v1718
      %1951 = vmatprep.subr.bf16.mxu0 0
      %1952 = vmatpush1.bf16.msra.mxu0 %v1719
      %1953 = vmatprep.subr.bf16.mxu0 0
      %1954 = vmatpush1.bf16.msra.mxu0 %v1720
      %1955 = vmatprep.subr.bf16.mxu0 0
      %1956 = vmatpush1.bf16.msra.mxu0 %v1721
      %1957 = vmatprep.subr.bf16.mxu0 0
      %1958 = vmatpush1.bf16.msra.mxu0 %v1722
      %1959 = vmatprep.mubr.bf16.mxu0 %v625
      %1960 = vmatmul.mubr.bf16.gmra.mrb[0].mxu0 %v624
      %v1961 = vpop.f32.mrb[0].mxu0
      %v1962 = vadd.f32 0.0, %v1961
      %v1963 = vpop.f32.mrb[0].mxu0
      %v1964 = vpop.f32.mrb[0].mxu0
      %v1965 = vpop.f32.mrb[0].mxu0
      %1966 = vdwg.mxu0
      %v1967 = vmul.f32 %v1962, %v628
      %v1968 = vpack.c.bf16 %v1967, %v1967
      %v1970 = vsel %vm1009, %v1968, 0
      %1972 = vmatprep.subr.bf16.mxu0 0
      %1973 = vmatpush1.bf16.msra.mxu0 %v1307
      %1974 = vmatprep.subr.bf16.mxu0 0
      %1975 = vmatpush1.bf16.msra.mxu0 %v1308
      %1976 = vmatprep.subr.bf16.mxu0 0
      %1977 = vmatpush1.bf16.msra.mxu0 0
      %1978 = vmatprep.subr.bf16.mxu0 0
      %1979 = vmatpush1.bf16.msra.mxu0 0
      %1980 = vmatprep.subr.bf16.mxu0 0
      %1981 = vmatpush1.bf16.msra.mxu0 0
      %1982 = vmatprep.subr.bf16.mxu0 0
      %1983 = vmatpush1.bf16.msra.mxu0 0
      %1984 = vmatprep.subr.bf16.mxu0 0
      %1985 = vmatpush1.bf16.msra.mxu0 0
      %1986 = vmatprep.subr.bf16.mxu0 0
      %1987 = vmatpush1.bf16.msra.mxu0 0
      %1988 = vmatprep.subr.bf16.mxu0 0
      %1989 = vmatpush1.bf16.msra.mxu0 0
      %1990 = vmatprep.subr.bf16.mxu0 0
      %1991 = vmatpush1.bf16.msra.mxu0 0
      %1992 = vmatprep.subr.bf16.mxu0 0
      %1993 = vmatpush1.bf16.msra.mxu0 0
      %1994 = vmatprep.subr.bf16.mxu0 0
      %1995 = vmatpush1.bf16.msra.mxu0 0
      %1996 = vmatprep.subr.bf16.mxu0 0
      %1997 = vmatpush1.bf16.msra.mxu0 0
      %1998 = vmatprep.subr.bf16.mxu0 0
      %1999 = vmatpush1.bf16.msra.mxu0 0
      %2000 = vmatprep.subr.bf16.mxu0 0
      %2001 = vmatpush1.bf16.msra.mxu0 0
      %2002 = vmatprep.subr.bf16.mxu0 0
      %2003 = vmatpush1.bf16.msra.mxu0 0
      %2004 = vmatprep.mubr.bf16.mxu0 0
      %2005 = vmatmul.mubr.bf16.gmra.mrb[0].mxu0 %v1970
      %v2006 = vpop.f32.mrb[0].mxu0
      %v2007 = vadd.f32 %v1297, %v2006
      %v2008 = vpop.f32.mrb[0].mxu0
      %v2009 = vpop.f32.mrb[0].mxu0
      %v2010 = vpop.f32.mrb[0].mxu0
      %2011 = vdwg.mxu0
      %2012 = vst [vmem:[%s570] sm:$0x1] %v1246
      %2013 = vst [vmem:[%s573] sm:$0x1] %v1922
      %v2015 = vrot.slane %v2007, 4
      %v2017 = vsel %vm618, %v1349, %v2015
      %v2018 = vmul.f32 %v2017, %v2017
      %2019 = vadd.xlane.f32.xlu0 %v2018
      %v2020 = vpop.xlane.xlu0 %2019
      %v2021 = vmax.f32 %v2020, 1e-24
      %v2022 = vrsqrt.pop %v2021
      %v2023 = vmul.f32 %v2017, %v2022
      %v2024 = vpack.c.bf16 %v2023, %v2023
      %2025 = vmatprep.subr.bf16.mxu0 0
      %2026 = vmatpush1.bf16.xpose.msra.mxu0 %v2024
      %2027 = vmatprep.subr.bf16.mxu0 0
      %2028 = vmatpush1.bf16.xpose.msra.mxu0 0
      %2029 = vmatprep.subr.bf16.mxu0 0
      %2030 = vmatpush1.bf16.xpose.msra.mxu0 0
      %2031 = vmatprep.subr.bf16.mxu0 0
      %2032 = vmatpush1.bf16.xpose.msra.mxu0 0
      %2033 = vmatprep.subr.bf16.mxu0 0
      %2034 = vmatpush1.bf16.xpose.msra.mxu0 0
      %2035 = vmatprep.subr.bf16.mxu0 0
      %2036 = vmatpush1.bf16.xpose.msra.mxu0 0
      %2037 = vmatprep.subr.bf16.mxu0 0
      %2038 = vmatpush1.bf16.xpose.msra.mxu0 0
      %2039 = vmatprep.subr.bf16.mxu0 0
      %2040 = vmatpush1.bf16.xpose.msra.mxu0 0
      %2041 = vmatprep.subr.bf16.mxu0 0
      %2042 = vmatpush1.bf16.xpose.msra.mxu0 0
      %2043 = vmatprep.subr.bf16.mxu0 0
      %2044 = vmatpush1.bf16.xpose.msra.mxu0 0
      %2045 = vmatprep.subr.bf16.mxu0 0
      %2046 = vmatpush1.bf16.xpose.msra.mxu0 0
      %2047 = vmatprep.subr.bf16.mxu0 0
      %2048 = vmatpush1.bf16.xpose.msra.mxu0 0
      %2049 = vmatprep.subr.bf16.mxu0 0
      %2050 = vmatpush1.bf16.xpose.msra.mxu0 0
      %2051 = vmatprep.subr.bf16.mxu0 0
      %2052 = vmatpush1.bf16.xpose.msra.mxu0 0
      %2053 = vmatprep.subr.bf16.mxu0 0
      %2054 = vmatpush1.bf16.xpose.msra.mxu0 0
      %2055 = vmatprep.subr.bf16.mxu0 0
      %2056 = vmatpush1.bf16.xpose.msra.mxu0 0
      %2057 = vmatprep.mubr.bf16.mxu0 0
      %2058 = vmatmul.mubr.bf16.gmra.mrb[0].mxu0 %v2024
      %v2059 = vpop.f32.mrb[0].mxu0
      %v2060 = vadd.f32 0.0, %v2059
      %v2061 = vpop.f32.mrb[0].mxu0
      %v2062 = vpop.f32.mrb[0].mxu0
      %v2063 = vpop.f32.mrb[0].mxu0
      %2064 = vdwg.mxu0
      %v2065 = vmul.f32 %v2060, 2.0
      %v2066 = vlaneseq
      %v2067 = vand.u32 %v2066, 127
      %vm2068 = vcmp.eq.s32.totalorder %v605, %v2067
      %v2069 = vsel %vm2068, -1e+30, %v2065
      %vm2070 = vcmask 64512
      %v2071 = vsel %vm2070, %v2069, -inf
      %2072 = vmax.xlane.f32.xlu0 %v2071
      %v2073 = vpop.xlane.xlu0 %2072
      %v2074 = vsub.f32 %v2069, %v2073
      %v2075 = vmul.f32 %v2074, 1.442695
      %v2076 = vpow.pop %v2075
      %v2077 = vsel %vm2070, %v2076, 0.0
      %2078 = vadd.xlane.f32.xlu0 %v2077
      %v2079 = vpop.xlane.xlu0 %2078
      %v2080 = vlog2.pop %v2079
      %v2081 = vmul.f32 %v2080, 0.6931472
      %v2082 = vadd.f32 %v2073, %v2081
      %v2084 = vrot.slane %v2023, 4
      %v2086 = vmul.f32 %v2023, %v2084
      %v2087 = vsel %vm618, %v2086, 0.0
      %2088 = vadd.xlane.f32.xlu0 %v2087
      %v2089 = vpop.xlane.xlu0 %2088
      %v2090 = vmul.f32 %v2089, 2.0
      %v2092 = vrot.slane %v2090, 4
      %v2094 = vsel %vm618, %v2090, %v2092
      %v2096 = vrot.slane %v623, 4
      %v2098 = vsel %vm618, %v623, %v2096
      %vm2099 = vcmp.gt.f32.partialorder %v2098, 0.0
      %v2100 = vsub.f32 %v2082, %v2094
      %v2101 = vsel %vm2099, %v2100, 0.0
      %vm2102 = vcmask 7168
      %v2103 = vsel %vm2102, %v2101, 0.0
      %2104 = vadd.xlane.f32.xlu0 %v2103
      %v2105 = vpop.xlane.xlu0 %2104
      %v2106 = vrot.slane %v2105, 4
      %v2107 = vadd.f32 %v2105, %v2106
      %v2108 = vrot.slane %v2107, 2
      %v2109 = vadd.f32 %v2107, %v2108
      %v2110 = vrot.slane %v2109, 1
      %v2111 = vadd.f32 %v2109, %v2110
      %s2112 = vtos %v2111
      %v2113 = vstv %s2112
      %vm2114 = vcmask 0
      %2115 = vst.msk [vmem:[%s576] sm:$0x1] %vm2114, %v2113
      %v2116 = vsel %vm2099, 1, 0
      %v2117 = vcvt.s32.f32 %v2116
      %v2118 = vsel %vm2102, %v2117, 0.0
      %2119 = vadd.xlane.f32.xlu0 %v2118
      %v2120 = vpop.xlane.xlu0 %2119
      %v2121 = vrot.slane %v2120, 4
      %v2122 = vadd.f32 %v2120, %v2121
      %v2123 = vrot.slane %v2122, 2
      %v2124 = vadd.f32 %v2122, %v2123
      %v2125 = vrot.slane %v2124, 1
      %v2126 = vadd.f32 %v2124, %v2125
      %s2127 = vtos %v2126
      %v2128 = vstv %s2127
      %2129 = vst.msk [vmem:[%s579] sm:$0x1] %vm2114, %v2128
      %p2130 = scmp.lt.s32.totalorder %s28, 1
      %s2131 = scalar_select %p2130, %s28, 1
      %s2132 = scalar_lea.vmem %s13, %s2131
      %p2133 = scmp.lt.s32.totalorder %s28, 1
      %s2134 = scalar_select %p2133, %s28, 1
      %s2135 = scalar_lea.vmem %s14, %s2134
      %p2136 = scmp.lt.s32.totalorder %s28, 1
      %s2137 = scalar_select %p2136, %s28, 1
      %s2138 = scalar_lea.vmem %s15, %s2137
      %p2139 = scmp.lt.s32.totalorder %s28, 1
      %s2140 = scalar_select %p2139, %s28, 1
      %s2141 = scalar_lea.vmem %s16, %s2140
      // Predicated region
      $region73: #{forward.2} parent=71 // pred_check
        %p2142 = pneg %p334
      $region74: #{forward.2} parent=71 // pred_check_branch
        %2144 = sbr.rel (%p2142) target = $region76
      $region75: #{forward.2} parent=71 // pred_region
        _
      $region76: #{forward.2} parent=71 // pred_fallthru
        _
      // Predicated region
      $region77: #{forward.2} parent=71 // pred_check
        %p2145 = pneg %p360
      $region78: #{forward.2} parent=71 // pred_check_branch
        %2147 = sbr.rel (%p2145) target = $region80
      $region79: #{forward.2} parent=71 // pred_region
        _
      $region80: #{forward.2} parent=71 // pred_fallthru
        _
      // Predicated region
      $region81: #{forward.2} parent=71 // pred_check
        %p2148 = pneg %p386
      $region82: #{forward.2} parent=71 // pred_check_branch
        %2150 = sbr.rel (%p2148) target = $region84
      $region83: #{forward.2} parent=71 // pred_region
        _
      $region84: #{forward.2} parent=71 // pred_fallthru
        _
      // Predicated region
      $region85: #{forward.2} parent=71 // pred_check
        %p2151 = pneg %p412
      $region86: #{forward.2} parent=71 // pred_check_branch
        %2153 = sbr.rel (%p2151) target = $region88
      $region87: #{forward.2} parent=71 // pred_region
        _
      $region88: #{forward.2} parent=71 // pred_fallthru
        _
    $region72: #{forward.2} parent=5 // pred_fallthru
      _
    %p2154 = scmp.le.s32.totalorder 2, %s23
    // Predicated region
    $region89: #{forward.2} parent=5 // pred_check
      %p2155 = pneg %p2154
    $region90: #{forward.2} parent=5 // pred_check_branch
      %2157 = sbr.rel (%p2155) target = $region92
    $region91: #{forward.2} parent=5 // pred_region
      %s2158 = ssub.s32 %s23, 2
      // Predicated region
      $region93: #{forward.2} parent=91 // pred_check
        %p2159 = pneg %p340
      $region94: #{forward.2} parent=91 // pred_check_branch
        %2161 = sbr.rel (%p2159) target = $region96
      $region95: #{forward.2} parent=91 // pred_region
        %p2162 = scmp.lt.s32.totalorder %s29, 1
        %s2163 = scalar_select %p2162, %s29, 1
        %s2164 = scalar_lea.vmem %s13, %s2163
      $region96: #{forward.2} parent=91 // pred_fallthru
        _
      // Predicated region
      $region97: #{forward.2} parent=91 // pred_check
        %p2165 = pneg %p366
      $region98: #{forward.2} parent=91 // pred_check_branch
        %2167 = sbr.rel (%p2165) target = $region100
      $region99: #{forward.2} parent=91 // pred_region
        %p2168 = scmp.lt.s32.totalorder %s29, 1
        %s2169 = scalar_select %p2168, %s29, 1
        %s2170 = scalar_lea.vmem %s14, %s2169
      $region100: #{forward.2} parent=91 // pred_fallthru
        _
      // Predicated region
      $region101: #{forward.2} parent=91 // pred_check
        %p2171 = pneg %p392
      $region102: #{forward.2} parent=91 // pred_check_branch
        %2173 = sbr.rel (%p2171) target = $region104
      $region103: #{forward.2} parent=91 // pred_region
        %p2174 = scmp.lt.s32.totalorder %s29, 1
        %s2175 = scalar_select %p2174, %s29, 1
        %s2176 = scalar_lea.vmem %s15, %s2175
      $region104: #{forward.2} parent=91 // pred_fallthru
        _
      // Predicated region
      $region105: #{forward.2} parent=91 // pred_check
        %p2177 = pneg %p418
      $region106: #{forward.2} parent=91 // pred_check_branch
        %2179 = sbr.rel (%p2177) target = $region108
      $region107: #{forward.2} parent=91 // pred_region
        %p2180 = scmp.lt.s32.totalorder %s29, 1
        %s2181 = scalar_select %p2180, %s29, 1
        %s2182 = scalar_lea.vmem %s16, %s2181
      $region108: #{forward.2} parent=91 // pred_fallthru
        _
    $region92: #{forward.2} parent=5 // pred_fallthru
      _
  $region6: #{forward.2} parent=0 // loop_footer
    %s27 = sadd.s32 1, %s23
  $region7: #{forward.2} parent=0 // loop_footer_branch
    %22 = sbr.rel target = $region3
  $region8: #{forward.2} parent=0 // loop_exit
    _

</llo_original>
